<compile_context>
chip_gen: v6e
topology: v6e:2x2x1
jax: 0.10.0
libtpu: 0.0.40
codegen_flags: <defaults>
</compile_context>

<pallas_src>
import jax
import jax.numpy as jnp
import numpy as np
from jax.experimental import pallas as pl
from jax.experimental.pallas import tpu as pltpu


def lstm_forward_kernel(ids_ref,    # (S*Bp, 1) int32  token ids, time-major, batch-padded
                        ew0_ref,    # (V, G)    bf16   emb @ W_ih0^T (fused embed + layer-0 input proj)
                        whh0_ref,   # (G, G)    bf16   [W_hh0^T ; 0]  zero rows for junk quarters of h0
                        b0_ref,     # (1, G)    f32    b_ih0 + b_hh0
                        w1_ref,     # (2G, G)   bf16   [[W_ih1^T ; 0] ; [W_hh1^T ; 0]]
                        b1_ref,     # (1, G)    f32    b_ih1 + b_hh1
                        wcls_ref,   # (S*H, Vp) bf16   classifier^T, vocab padded to Vp lanes
                        bcls_ref,   # (1, Vp)   f32
                        out_ref,    # (Bp, Vp)  f32    padded logits
                        gx0_ref,    # (S*Bp, G) f32    scratch: layer-0 pre-activations, all steps
                        hcat_ref):  # (Bp, S*H) f32    scratch: flatten(lstm_out) slab
    SB = ids_ref.shape[0]
    V = ew0_ref.shape[0]
    G = whh0_ref.shape[1]           # 4H (= 128 lanes -> one vreg wide at H=32)
    H = G // 4
    Bp = out_ref.shape[0]
    Vp = out_ref.shape[1]
    S = SB // Bp

    # ---- fused embedding lookup + layer-0 input projection for ALL timesteps ----
    # one-hot(ids) @ (emb @ W_ih0^T) == gather(emb, ids) @ W_ih0^T ; bias folded once.
    # TODO(synk): at production vocab sizes replace the one-hot matmul with a
    # scalar-prefetched / manual-DMA row gather of ew0.
    lane_v = jax.lax.broadcasted_iota(jnp.int32, (SB, V), 1)
    onehot = jnp.where(lane_v == jnp.broadcast_to(ids_ref[...], (SB, V)),
                       1.0, 0.0).astype(jnp.bfloat16)
    gx0_ref[...] = (jnp.dot(onehot, ew0_ref[...], preferred_element_type=jnp.float32)
                    + jnp.broadcast_to(b0_ref[...], (SB, G)))

    # ---- full-width gate math, single transcendental per gate vreg ----
    lane_g = jax.lax.broadcasted_iota(jnp.int32, (Bp, G), 1)
    is_cand = (lane_g >= 2 * H) & (lane_g < 3 * H)   # tanh quarter (PyTorch order i,f,g,o)

    def lstm_cell(g, c):
        # g, c: (Bp, G) f32.  tanh(x) = 2*sigmoid(2x) - 1 -> one EUP op on the gates.
        sg = jax.nn.sigmoid(jnp.where(is_cand, g + g, g))
        act = jnp.where(is_cand, sg + sg - 1.0, sg)      # [sig(i) | sig(f) | tanh(g~) | sig(o)]
        # pltpu.roll convention: out[j] = in[(j - shift) % G]
        cand_al = pltpu.roll(act, shift=2 * H, axis=1)   # quarter0 <- tanh(g~)
        f_al = pltpu.roll(act, shift=3 * H, axis=1)      # quarter0 <- sig(f)
        o_al = pltpu.roll(act, shift=H, axis=1)          # quarter0 <- sig(o)
        c = f_al * c + act * cand_al                     # quarter0: f*c + i*tanh(g~)
        h = o_al * jnp.tanh(c)                           # quarter0: o*tanh(c)
        return h, c                                      # only lanes [0, H) meaningful

    # Recurrent weights loaded just before the loop (not at kernel entry) so they are
    # not live through the embedding phase.
    whh0 = whh0_ref[...]
    w1 = w1_ref[...]
    b1 = jnp.broadcast_to(b1_ref[...], (Bp, G))          # hoisted broadcast

    zeros = jnp.zeros((Bp, G), jnp.float32)
    h0, c0 = zeros, zeros
    h1, c1 = zeros, zeros

    # ---- wavefronted 2-layer recurrence: S+1 dependent steps instead of 2*S ----
    # TODO(synk): if a bundle dump shows the (128,128) recurrent RHS being re-staged
    # every step, drive the MXU explicitly via pltpu.matmul_push_rhs / matmul_acc_lhs.
    for s in range(S + 1):                               # S small & static -> unrolled
        h0_in = h0                                       # h0_{s-1} (zeros at s == 0)
        if s < S:
            # layer-0 cell, step s
            g0 = (gx0_ref[s * Bp:(s + 1) * Bp, :]
                  + jnp.dot(h0_in.astype(jnp.bfloat16), whh0,
                            preferred_element_type=jnp.float32))
            h0, c0 = lstm_cell(g0, c0)
        if s >= 1:
            # layer-1 cell, step s-1 (independent of the layer-0 cell above):
            # input projection and recurrence fused into one K=2G dot.
            lhs1 = jnp.concatenate([h0_in, h1], axis=1).astype(jnp.bfloat16)  # (Bp, 2G)
            g1 = jnp.dot(lhs1, w1, preferred_element_type=jnp.float32) + b1
            h1, c1 = lstm_cell(g1, c1)
            hcat_ref[:, (s - 1) * H:s * H] = h1[:, :H]   # flatten(lstm_out) layout

    # ---- classifier: flatten(lstm_out) @ Wcls^T + b, one lane-dense K=S*H dot ----
    # TODO(synk): at production sizes (hidden=256, vocab~10k) tile this dot over the
    # vocab axis with a grid + pl.Buffered pipelining and add a "parallel" batch axis
    # so both v7x TensorCores are used; at toy shapes whole-array VMEM is optimal.
    h1_cat = hcat_ref[...].astype(jnp.bfloat16)          # (Bp, S*H)
    logits = jnp.dot(h1_cat, wcls_ref[...], preferred_element_type=jnp.float32)
    out_ref[...] = logits + jnp.broadcast_to(bcls_ref[...], (Bp, Vp))


def lstm_forward(x_ids, params):
    """x_ids: (B, S) int32 token ids. Returns logits (B, vocab) float32."""
    B, S = x_ids.shape
    V, G = params["ew0"].shape
    H = G // 4
    Vp = params["wcls_pad"].shape[1]
    Bp = ((B + 7) // 8) * 8          # pad batch to the 8-sublane vreg width

    ids = jnp.zeros((S, Bp), jnp.int32).at[:, :B].set(x_ids.T.astype(jnp.int32))
    ids = ids.reshape(S * Bp, 1)     # time-major, batch-padded

    vmem = pl.BlockSpec(memory_space=pltpu.MemorySpace.VMEM)
    logits_pad = pl.pallas_call(
        lstm_forward_kernel,
        out_shape=jax.ShapeDtypeStruct((Bp, Vp), jnp.float32),
        in_specs=[vmem] * 8,
        out_specs=vmem,
        scratch_shapes=[pltpu.VMEM((S * Bp, G), jnp.float32),   # layer-0 pre-activations
                        pltpu.VMEM((Bp, S * H), jnp.float32)],  # flattened layer-1 outputs
    )(ids, params["ew0"], params["whh0_pad"], params["b0"],
      params["w1_pad"], params["b1"], params["wcls_pad"], params["bcls_pad"])
    return logits_pad[:B, :V]


def _round_up(x, m):
    return ((x + m - 1) // m) * m


def init_params(key, vocab_size, seq_length, hidden):
    ks = jax.random.split(key, 11)
    V, S, H = vocab_size, seq_length, hidden
    G = 4 * H
    Vp = _round_up(V, 128)
    scale = 0.1

    emb = jax.random.normal(ks[0], (V, V), jnp.float32) * scale

    w_ih0 = jax.random.normal(ks[1], (G, V), jnp.float32) * scale
    w_hh0 = jax.random.normal(ks[2], (G, H), jnp.float32) * scale
    b_ih0 = jax.random.normal(ks[3], (G,), jnp.float32) * scale
    b_hh0 = jax.random.normal(ks[4], (G,), jnp.float32) * scale

    w_ih1 = jax.random.normal(ks[5], (G, H), jnp.float32) * scale
    w_hh1 = jax.random.normal(ks[6], (G, H), jnp.float32) * scale
    b_ih1 = jax.random.normal(ks[7], (G,), jnp.float32) * scale
    b_hh1 = jax.random.normal(ks[8], (G,), jnp.float32) * scale

    w_cls = jax.random.normal(ks[9], (V, S * H), jnp.float32) * scale
    b_cls = jax.random.normal(ks[10], (V,), jnp.float32) * scale

    def pad_rows(w_t):  # (H, G) -> (G, G): zero rows annihilate the junk quarters of h
        return jnp.zeros((G, G), jnp.float32).at[:H, :].set(w_t)

    # Fused layer-1 weight for [h0_t | h1_{t-1}] @ w1 -> gates (K = 2G).
    w1 = jnp.concatenate([pad_rows(w_ih1.T), pad_rows(w_hh1.T)], axis=0)   # (2G, G)

    return {
        # kernel-ready (packed / padded / bf16) parameters
        "ew0": jnp.dot(emb, w_ih0.T).astype(jnp.bfloat16),                 # (V, G)
        "whh0_pad": pad_rows(w_hh0.T).astype(jnp.bfloat16),                # (G, G)
        "b0": (b_ih0 + b_hh0)[None, :],                                    # (1, G) f32
        "w1_pad": w1.astype(jnp.bfloat16),                                 # (2G, G)
        "b1": (b_ih1 + b_hh1)[None, :],                                    # (1, G) f32
        "wcls_pad": jnp.pad(w_cls.T, ((0, 0), (0, Vp - V))).astype(jnp.bfloat16),  # (S*H, Vp)
        "bcls_pad": jnp.pad(b_cls, (0, Vp - V))[None, :],                  # (1, Vp) f32
        # raw f32 copies for the pure-JAX reference
        "embedding": emb,
        "_raw": (w_ih0, w_hh0, b_ih0, b_hh0, w_ih1, w_hh1, b_ih1, b_hh1, w_cls, b_cls),
    }


def reference_forward(x_ids, params):
    (w_ih0, w_hh0, b_ih0, b_hh0,
     w_ih1, w_hh1, b_ih1, b_hh1, w_cls, b_cls) = params["_raw"]
    emb = params["embedding"]
    x = jnp.take(emb, x_ids, axis=0)                      # (B, S, V)
    B, S, _ = x.shape
    H = w_hh0.shape[1]

    def cell(carry, x_t, w_ih, w_hh, b_ih, b_hh):
        h, c = carry
        g = x_t @ w_ih.T + h @ w_hh.T + b_ih + b_hh
        i, f, gg, o = jnp.split(g, 4, axis=-1)
        c = jax.nn.sigmoid(f) * c + jax.nn.sigmoid(i) * jnp.tanh(gg)
        h = jax.nn.sigmoid(o) * jnp.tanh(c)
        return (h, c), h

    def scan_layer(x_seq, w_ih, w_hh, b_ih, b_hh):
        init = (jnp.zeros((B, H)), jnp.zeros((B, H)))
        _, hs = jax.lax.scan(
            lambda carry, xt: cell(carry, xt, w_ih, w_hh, b_ih, b_hh),
            init, jnp.swapaxes(x_seq, 0, 1))
        return jnp.swapaxes(hs, 0, 1)                     # (B, S, H)

    out0 = scan_layer(x, w_ih0, w_hh0, b_ih0, b_hh0)
    out1 = scan_layer(out0, w_ih1, w_hh1, b_ih1, b_hh1)
    flat = out1.reshape(B, -1)
    return flat @ w_cls.T + b_cls


if __name__ == "__main__":
    # Small shapes consistent with the module: batch=4, seq=8, vocab=32, hidden=32.
    B, S, V, H = 4, 8, 32, 32
    key = jax.random.PRNGKey(0)
    k_param, k_x = jax.random.split(key)

    params = init_params(k_param, vocab_size=V, seq_length=S, hidden=H)
    x_ids = jax.random.randint(k_x, (B, S), 0, V, dtype=jnp.int32)

    logits = lstm_forward(x_ids, params)
    jax.block_until_ready(logits)

    ref = reference_forward(x_ids, params)
    # bf16 matmul operands (f32 accumulation) -> loosened tolerance vs f32 reference.
    np.testing.assert_allclose(np.asarray(logits), np.asarray(ref),
                               rtol=2e-2, atol=2e-2)

    print("KERNEL_OK")
</pallas_src>

<mosaic_0001>
module attributes {stable_mosaic.version = 11 : i64} {
  func.func @lstm_forward_kernel(%arg0: memref<64x1xi32, #tpu.memory_space<vmem>>, %arg1: memref<32x128xbf16, #tpu.memory_space<vmem>>, %arg2: memref<128x128xbf16, #tpu.memory_space<vmem>>, %arg3: memref<1x128xf32, #tpu.memory_space<vmem>>, %arg4: memref<256x128xbf16, #tpu.memory_space<vmem>>, %arg5: memref<1x128xf32, #tpu.memory_space<vmem>>, %arg6: memref<256x128xbf16, #tpu.memory_space<vmem>>, %arg7: memref<1x128xf32, #tpu.memory_space<vmem>>, %arg8: memref<8x128xf32, #tpu.memory_space<vmem>>, %arg9: memref<64x128xf32, #tpu.memory_space<vmem>>, %arg10: memref<8x256xf32, #tpu.memory_space<vmem>>) attributes {dimension_semantics = [], scalar_prefetch = 0 : i64, scratch_operands = 2 : i64, tpu.core_type = #tpu.core_type<tc>} {
    %0 = tpu.iota {dimensions = array<i32: 1>} : vector<64x32xi32>
    %c0 = arith.constant 0 : index
    %c0_0 = arith.constant 0 : index
    %1 = vector.load %arg0[%c0, %c0_0] : memref<64x1xi32, #tpu.memory_space<vmem>>, vector<64x1xi32>
    %2 = vector.shape_cast %1 : vector<64x1xi32> to vector<64x1xi32>
    %3 = vector.broadcast %2 : vector<64x1xi32> to vector<64x32xi32>
    %4 = arith.cmpi eq, %0, %3 : vector<64x32xi32>
    %cst = arith.constant 1.000000e+00 : f32
    %cst_1 = arith.constant 0.000000e+00 : f32
    %5 = vector.broadcast %cst : f32 to vector<64x32xf32>
    %6 = vector.broadcast %cst_1 : f32 to vector<64x32xf32>
    %7 = arith.select %4, %5, %6 : vector<64x32xi1>, vector<64x32xf32>
    %8 = arith.truncf %7 : vector<64x32xf32> to vector<64x32xbf16>
    %c0_2 = arith.constant 0 : index
    %c0_3 = arith.constant 0 : index
    %9 = vector.load %arg1[%c0_2, %c0_3] : memref<32x128xbf16, #tpu.memory_space<vmem>>, vector<32x128xbf16>
    %cst_4 = arith.constant dense<0.000000e+00> : vector<64x128xf32>
    %10 = tpu.matmul %8, %9, %cst_4 {dimension_numbers = #tpu.dot_dimension_numbers<[1], [0], [0], [1], [0, 0, 1, 1], [], []>} : vector<64x32xbf16>, vector<32x128xbf16>, vector<64x128xf32> -> vector<64x128xf32>
    %c0_5 = arith.constant 0 : index
    %c0_6 = arith.constant 0 : index
    %11 = vector.load %arg3[%c0_5, %c0_6] : memref<1x128xf32, #tpu.memory_space<vmem>>, vector<1x128xf32>
    %12 = vector.shape_cast %11 : vector<1x128xf32> to vector<1x128xf32>
    %13 = vector.broadcast %12 : vector<1x128xf32> to vector<64x128xf32>
    %14 = arith.addf %10, %13 : vector<64x128xf32>
    %c0_7 = arith.constant 0 : index
    %c0_8 = arith.constant 0 : index
    %15 = vector.load %arg9[%c0_7, %c0_8] : memref<64x128xf32, #tpu.memory_space<vmem>>, vector<64x128xf32>
    tpu.vector_store %arg9[%c0_7, %c0_8], %14 {strides = array<i32>} : memref<64x128xf32, #tpu.memory_space<vmem>>, vector<64x128xf32>,
    %16 = tpu.iota {dimensions = array<i32: 1>} : vector<8x128xi32>
    %c64_i32 = arith.constant 64 : i32
    %17 = vector.broadcast %c64_i32 : i32 to vector<8x128xi32>
    %18 = arith.cmpi sge, %16, %17 : vector<8x128xi32>
    %c96_i32 = arith.constant 96 : i32
    %19 = vector.broadcast %c96_i32 : i32 to vector<8x128xi32>
    %20 = arith.cmpi slt, %16, %19 : vector<8x128xi32>
    %21 = arith.andi %18, %20 : vector<8x128xi1>
    %c0_9 = arith.constant 0 : index
    %c0_10 = arith.constant 0 : index
    %22 = vector.load %arg2[%c0_9, %c0_10] : memref<128x128xbf16, #tpu.memory_space<vmem>>, vector<128x128xbf16>
    %c0_11 = arith.constant 0 : index
    %c0_12 = arith.constant 0 : index
    %23 = vector.load %arg4[%c0_11, %c0_12] : memref<256x128xbf16, #tpu.memory_space<vmem>>, vector<256x128xbf16>
    %c0_13 = arith.constant 0 : index
    %c0_14 = arith.constant 0 : index
    %24 = vector.load %arg5[%c0_13, %c0_14] : memref<1x128xf32, #tpu.memory_space<vmem>>, vector<1x128xf32>
    %25 = vector.shape_cast %24 : vector<1x128xf32> to vector<1x128xf32>
    %26 = vector.broadcast %25 : vector<1x128xf32> to vector<8x128xf32>
    %cst_15 = arith.constant 0.000000e+00 : f32
    %27 = vector.broadcast %cst_15 : f32 to vector<8x128xf32>
    %c0_16 = arith.constant 0 : index
    %c0_17 = arith.constant 0 : index
    %28 = vector.load %arg9[%c0_16, %c0_17] : memref<64x128xf32, #tpu.memory_space<vmem>>, vector<8x128xf32>
    %29 = arith.truncf %27 : vector<8x128xf32> to vector<8x128xbf16>
    %cst_18 = arith.constant dense<0.000000e+00> : vector<8x128xf32>
    %30 = tpu.matmul %29, %22, %cst_18 {dimension_numbers = #tpu.dot_dimension_numbers<[1], [0], [0], [1], [0, 0, 1, 1], [], []>} : vector<8x128xbf16>, vector<128x128xbf16>, vector<8x128xf32> -> vector<8x128xf32>
    %31 = arith.addf %28, %30 : vector<8x128xf32>
    %32 = arith.addf %31, %31 : vector<8x128xf32>
    %33 = arith.select %21, %32, %31 : vector<8x128xi1>, vector<8x128xf32>
    %34 = arith.negf %33 : vector<8x128xf32>
    %35 = math.exp %34 : vector<8x128xf32>
    %cst_19 = arith.constant 1.000000e+00 : f32
    %36 = vector.broadcast %cst_19 : f32 to vector<8x128xf32>
    %37 = arith.addf %36, %35 : vector<8x128xf32>
    %38 = arith.divf %36, %37 : vector<8x128xf32>
    %39 = arith.addf %38, %38 : vector<8x128xf32>
    %cst_20 = arith.constant 1.000000e+00 : f32
    %40 = vector.broadcast %cst_20 : f32 to vector<8x128xf32>
    %41 = arith.subf %39, %40 : vector<8x128xf32>
    %42 = arith.select %21, %41, %38 : vector<8x128xi1>, vector<8x128xf32>
    %c64_i32_21 = arith.constant 64 : i32
    %43 = tpu.dynamic_rotate %42 by %c64_i32_21 dim 1 : vector<8x128xf32>, i32 -> vector<8x128xf32>
    %c96_i32_22 = arith.constant 96 : i32
    %44 = tpu.dynamic_rotate %42 by %c96_i32_22 dim 1 : vector<8x128xf32>, i32 -> vector<8x128xf32>
    %c32_i32 = arith.constant 32 : i32
    %45 = tpu.dynamic_rotate %42 by %c32_i32 dim 1 : vector<8x128xf32>, i32 -> vector<8x128xf32>
    %46 = arith.mulf %44, %27 : vector<8x128xf32>
    %47 = arith.mulf %42, %43 : vector<8x128xf32>
    %48 = arith.addf %46, %47 : vector<8x128xf32>
    %49 = math.tanh %48 : vector<8x128xf32>
    %50 = arith.mulf %45, %49 : vector<8x128xf32>
    %c8 = arith.constant 8 : index
    %c0_23 = arith.constant 0 : index
    %51 = vector.load %arg9[%c8, %c0_23] : memref<64x128xf32, #tpu.memory_space<vmem>>, vector<8x128xf32>
    %52 = arith.truncf %50 : vector<8x128xf32> to vector<8x128xbf16>
    %cst_24 = arith.constant dense<0.000000e+00> : vector<8x128xf32>
    %53 = tpu.matmul %52, %22, %cst_24 {dimension_numbers = #tpu.dot_dimension_numbers<[1], [0], [0], [1], [0, 0, 1, 1], [], []>} : vector<8x128xbf16>, vector<128x128xbf16>, vector<8x128xf32> -> vector<8x128xf32>
    %54 = arith.addf %51, %53 : vector<8x128xf32>
    %55 = arith.addf %54, %54 : vector<8x128xf32>
    %56 = arith.select %21, %55, %54 : vector<8x128xi1>, vector<8x128xf32>
    %57 = arith.negf %56 : vector<8x128xf32>
    %58 = math.exp %57 : vector<8x128xf32>
    %cst_25 = arith.constant 1.000000e+00 : f32
    %59 = vector.broadcast %cst_25 : f32 to vector<8x128xf32>
    %60 = arith.addf %59, %58 : vector<8x128xf32>
    %61 = arith.divf %59, %60 : vector<8x128xf32>
    %62 = arith.addf %61, %61 : vector<8x128xf32>
    %cst_26 = arith.constant 1.000000e+00 : f32
    %63 = vector.broadcast %cst_26 : f32 to vector<8x128xf32>
    %64 = arith.subf %62, %63 : vector<8x128xf32>
    %65 = arith.select %21, %64, %61 : vector<8x128xi1>, vector<8x128xf32>
    %c64_i32_27 = arith.constant 64 : i32
    %66 = tpu.dynamic_rotate %65 by %c64_i32_27 dim 1 : vector<8x128xf32>, i32 -> vector<8x128xf32>
    %c96_i32_28 = arith.constant 96 : i32
    %67 = tpu.dynamic_rotate %65 by %c96_i32_28 dim 1 : vector<8x128xf32>, i32 -> vector<8x128xf32>
    %c32_i32_29 = arith.constant 32 : i32
    %68 = tpu.dynamic_rotate %65 by %c32_i32_29 dim 1 : vector<8x128xf32>, i32 -> vector<8x128xf32>
    %69 = arith.mulf %67, %48 : vector<8x128xf32>
    %70 = arith.mulf %65, %66 : vector<8x128xf32>
    %71 = arith.addf %69, %70 : vector<8x128xf32>
    %72 = math.tanh %71 : vector<8x128xf32>
    %73 = arith.mulf %68, %72 : vector<8x128xf32>
    %74 = tpu.concatenate %50, %27 in 1 : vector<8x128xf32>, vector<8x128xf32> -> vector<8x256xf32>
    %75 = arith.truncf %74 : vector<8x256xf32> to vector<8x256xbf16>
    %cst_30 = arith.constant dense<0.000000e+00> : vector<8x128xf32>
    %76 = tpu.matmul %75, %23, %cst_30 {dimension_numbers = #tpu.dot_dimension_numbers<[1], [0], [0], [1], [0, 0, 1, 1], [], []>} : vector<8x256xbf16>, vector<256x128xbf16>, vector<8x128xf32> -> vector<8x128xf32>
    %77 = arith.addf %76, %26 : vector<8x128xf32>
    %78 = arith.addf %77, %77 : vector<8x128xf32>
    %79 = arith.select %21, %78, %77 : vector<8x128xi1>, vector<8x128xf32>
    %80 = arith.negf %79 : vector<8x128xf32>
    %81 = math.exp %80 : vector<8x128xf32>
    %cst_31 = arith.constant 1.000000e+00 : f32
    %82 = vector.broadcast %cst_31 : f32 to vector<8x128xf32>
    %83 = arith.addf %82, %81 : vector<8x128xf32>
    %84 = arith.divf %82, %83 : vector<8x128xf32>
    %85 = arith.addf %84, %84 : vector<8x128xf32>
    %cst_32 = arith.constant 1.000000e+00 : f32
    %86 = vector.broadcast %cst_32 : f32 to vector<8x128xf32>
    %87 = arith.subf %85, %86 : vector<8x128xf32>
    %88 = arith.select %21, %87, %84 : vector<8x128xi1>, vector<8x128xf32>
    %c64_i32_33 = arith.constant 64 : i32
    %89 = tpu.dynamic_rotate %88 by %c64_i32_33 dim 1 : vector<8x128xf32>, i32 -> vector<8x128xf32>
    %c96_i32_34 = arith.constant 96 : i32
    %90 = tpu.dynamic_rotate %88 by %c96_i32_34 dim 1 : vector<8x128xf32>, i32 -> vector<8x128xf32>
    %c32_i32_35 = arith.constant 32 : i32
    %91 = tpu.dynamic_rotate %88 by %c32_i32_35 dim 1 : vector<8x128xf32>, i32 -> vector<8x128xf32>
    %92 = arith.mulf %90, %27 : vector<8x128xf32>
    %93 = arith.mulf %88, %89 : vector<8x128xf32>
    %94 = arith.addf %92, %93 : vector<8x128xf32>
    %95 = math.tanh %94 : vector<8x128xf32>
    %96 = arith.mulf %91, %95 : vector<8x128xf32>
    %97 = vector.extract_strided_slice %96 {offsets = [0, 0], sizes = [8, 32], strides = [1, 1]} : vector<8x128xf32> to vector<8x32xf32>
    %c0_36 = arith.constant 0 : index
    %c0_37 = arith.constant 0 : index
    %98 = vector.load %arg10[%c0_36, %c0_37] : memref<8x256xf32, #tpu.memory_space<vmem>>, vector<8x32xf32>
    tpu.vector_store %arg10[%c0_36, %c0_37], %97 {strides = array<i32>} : memref<8x256xf32, #tpu.memory_space<vmem>>, vector<8x32xf32>,
    %c16 = arith.constant 16 : index
    %c0_38 = arith.constant 0 : index
    %99 = vector.load %arg9[%c16, %c0_38] : memref<64x128xf32, #tpu.memory_space<vmem>>, vector<8x128xf32>
    %100 = arith.truncf %73 : vector<8x128xf32> to vector<8x128xbf16>
    %cst_39 = arith.constant dense<0.000000e+00> : vector<8x128xf32>
    %101 = tpu.matmul %100, %22, %cst_39 {dimension_numbers = #tpu.dot_dimension_numbers<[1], [0], [0], [1], [0, 0, 1, 1], [], []>} : vector<8x128xbf16>, vector<128x128xbf16>, vector<8x128xf32> -> vector<8x128xf32>
    %102 = arith.addf %99, %101 : vector<8x128xf32>
    %103 = arith.addf %102, %102 : vector<8x128xf32>
    %104 = arith.select %21, %103, %102 : vector<8x128xi1>, vector<8x128xf32>
    %105 = arith.negf %104 : vector<8x128xf32>
    %106 = math.exp %105 : vector<8x128xf32>
    %cst_40 = arith.constant 1.000000e+00 : f32
    %107 = vector.broadcast %cst_40 : f32 to vector<8x128xf32>
    %108 = arith.addf %107, %106 : vector<8x128xf32>
    %109 = arith.divf %107, %108 : vector<8x128xf32>
    %110 = arith.addf %109, %109 : vector<8x128xf32>
    %cst_41 = arith.constant 1.000000e+00 : f32
    %111 = vector.broadcast %cst_41 : f32 to vector<8x128xf32>
    %112 = arith.subf %110, %111 : vector<8x128xf32>
    %113 = arith.select %21, %112, %109 : vector<8x128xi1>, vector<8x128xf32>
    %c64_i32_42 = arith.constant 64 : i32
    %114 = tpu.dynamic_rotate %113 by %c64_i32_42 dim 1 : vector<8x128xf32>, i32 -> vector<8x128xf32>
    %c96_i32_43 = arith.constant 96 : i32
    %115 = tpu.dynamic_rotate %113 by %c96_i32_43 dim 1 : vector<8x128xf32>, i32 -> vector<8x128xf32>
    %c32_i32_44 = arith.constant 32 : i32
    %116 = tpu.dynamic_rotate %113 by %c32_i32_44 dim 1 : vector<8x128xf32>, i32 -> vector<8x128xf32>
    %117 = arith.mulf %115, %71 : vector<8x128xf32>
    %118 = arith.mulf %113, %114 : vector<8x128xf32>
    %119 = arith.addf %117, %118 : vector<8x128xf32>
    %120 = math.tanh %119 : vector<8x128xf32>
    %121 = arith.mulf %116, %120 : vector<8x128xf32>
    %122 = tpu.concatenate %73, %96 in 1 : vector<8x128xf32>, vector<8x128xf32> -> vector<8x256xf32>
    %123 = arith.truncf %122 : vector<8x256xf32> to vector<8x256xbf16>
    %cst_45 = arith.constant dense<0.000000e+00> : vector<8x128xf32>
    %124 = tpu.matmul %123, %23, %cst_45 {dimension_numbers = #tpu.dot_dimension_numbers<[1], [0], [0], [1], [0, 0, 1, 1], [], []>} : vector<8x256xbf16>, vector<256x128xbf16>, vector<8x128xf32> -> vector<8x128xf32>
    %125 = arith.addf %124, %26 : vector<8x128xf32>
    %126 = arith.addf %125, %125 : vector<8x128xf32>
    %127 = arith.select %21, %126, %125 : vector<8x128xi1>, vector<8x128xf32>
    %128 = arith.negf %127 : vector<8x128xf32>
    %129 = math.exp %128 : vector<8x128xf32>
    %cst_46 = arith.constant 1.000000e+00 : f32
    %130 = vector.broadcast %cst_46 : f32 to vector<8x128xf32>
    %131 = arith.addf %130, %129 : vector<8x128xf32>
    %132 = arith.divf %130, %131 : vector<8x128xf32>
    %133 = arith.addf %132, %132 : vector<8x128xf32>
    %cst_47 = arith.constant 1.000000e+00 : f32
    %134 = vector.broadcast %cst_47 : f32 to vector<8x128xf32>
    %135 = arith.subf %133, %134 : vector<8x128xf32>
    %136 = arith.select %21, %135, %132 : vector<8x128xi1>, vector<8x128xf32>
    %c64_i32_48 = arith.constant 64 : i32
    %137 = tpu.dynamic_rotate %136 by %c64_i32_48 dim 1 : vector<8x128xf32>, i32 -> vector<8x128xf32>
    %c96_i32_49 = arith.constant 96 : i32
    %138 = tpu.dynamic_rotate %136 by %c96_i32_49 dim 1 : vector<8x128xf32>, i32 -> vector<8x128xf32>
    %c32_i32_50 = arith.constant 32 : i32
    %139 = tpu.dynamic_rotate %136 by %c32_i32_50 dim 1 : vector<8x128xf32>, i32 -> vector<8x128xf32>
    %140 = arith.mulf %138, %94 : vector<8x128xf32>
    %141 = arith.mulf %136, %137 : vector<8x128xf32>
    %142 = arith.addf %140, %141 : vector<8x128xf32>
    %143 = math.tanh %142 : vector<8x128xf32>
    %144 = arith.mulf %139, %143 : vector<8x128xf32>
    %145 = vector.extract_strided_slice %144 {offsets = [0, 0], sizes = [8, 32], strides = [1, 1]} : vector<8x128xf32> to vector<8x32xf32>
    %c0_51 = arith.constant 0 : index
    %c32 = arith.constant 32 : index
    %146 = vector.load %arg10[%c0_51, %c32] : memref<8x256xf32, #tpu.memory_space<vmem>>, vector<8x32xf32>
    tpu.vector_store %arg10[%c0_51, %c32], %145 {strides = array<i32>} : memref<8x256xf32, #tpu.memory_space<vmem>>, vector<8x32xf32>,
    %c24 = arith.constant 24 : index
    %c0_52 = arith.constant 0 : index
    %147 = vector.load %arg9[%c24, %c0_52] : memref<64x128xf32, #tpu.memory_space<vmem>>, vector<8x128xf32>
    %148 = arith.truncf %121 : vector<8x128xf32> to vector<8x128xbf16>
    %cst_53 = arith.constant dense<0.000000e+00> : vector<8x128xf32>
    %149 = tpu.matmul %148, %22, %cst_53 {dimension_numbers = #tpu.dot_dimension_numbers<[1], [0], [0], [1], [0, 0, 1, 1], [], []>} : vector<8x128xbf16>, vector<128x128xbf16>, vector<8x128xf32> -> vector<8x128xf32>
    %150 = arith.addf %147, %149 : vector<8x128xf32>
    %151 = arith.addf %150, %150 : vector<8x128xf32>
    %152 = arith.select %21, %151, %150 : vector<8x128xi1>, vector<8x128xf32>
    %153 = arith.negf %152 : vector<8x128xf32>
    %154 = math.exp %153 : vector<8x128xf32>
    %cst_54 = arith.constant 1.000000e+00 : f32
    %155 = vector.broadcast %cst_54 : f32 to vector<8x128xf32>
    %156 = arith.addf %155, %154 : vector<8x128xf32>
    %157 = arith.divf %155, %156 : vector<8x128xf32>
    %158 = arith.addf %157, %157 : vector<8x128xf32>
    %cst_55 = arith.constant 1.000000e+00 : f32
    %159 = vector.broadcast %cst_55 : f32 to vector<8x128xf32>
    %160 = arith.subf %158, %159 : vector<8x128xf32>
    %161 = arith.select %21, %160, %157 : vector<8x128xi1>, vector<8x128xf32>
    %c64_i32_56 = arith.constant 64 : i32
    %162 = tpu.dynamic_rotate %161 by %c64_i32_56 dim 1 : vector<8x128xf32>, i32 -> vector<8x128xf32>
    %c96_i32_57 = arith.constant 96 : i32
    %163 = tpu.dynamic_rotate %161 by %c96_i32_57 dim 1 : vector<8x128xf32>, i32 -> vector<8x128xf32>
    %c32_i32_58 = arith.constant 32 : i32
    %164 = tpu.dynamic_rotate %161 by %c32_i32_58 dim 1 : vector<8x128xf32>, i32 -> vector<8x128xf32>
    %165 = arith.mulf %163, %119 : vector<8x128xf32>
    %166 = arith.mulf %161, %162 : vector<8x128xf32>
    %167 = arith.addf %165, %166 : vector<8x128xf32>
    %168 = math.tanh %167 : vector<8x128xf32>
    %169 = arith.mulf %164, %168 : vector<8x128xf32>
    %170 = tpu.concatenate %121, %144 in 1 : vector<8x128xf32>, vector<8x128xf32> -> vector<8x256xf32>
    %171 = arith.truncf %170 : vector<8x256xf32> to vector<8x256xbf16>
    %cst_59 = arith.constant dense<0.000000e+00> : vector<8x128xf32>
    %172 = tpu.matmul %171, %23, %cst_59 {dimension_numbers = #tpu.dot_dimension_numbers<[1], [0], [0], [1], [0, 0, 1, 1], [], []>} : vector<8x256xbf16>, vector<256x128xbf16>, vector<8x128xf32> -> vector<8x128xf32>
    %173 = arith.addf %172, %26 : vector<8x128xf32>
    %174 = arith.addf %173, %173 : vector<8x128xf32>
    %175 = arith.select %21, %174, %173 : vector<8x128xi1>, vector<8x128xf32>
    %176 = arith.negf %175 : vector<8x128xf32>
    %177 = math.exp %176 : vector<8x128xf32>
    %cst_60 = arith.constant 1.000000e+00 : f32
    %178 = vector.broadcast %cst_60 : f32 to vector<8x128xf32>
    %179 = arith.addf %178, %177 : vector<8x128xf32>
    %180 = arith.divf %178, %179 : vector<8x128xf32>
    %181 = arith.addf %180, %180 : vector<8x128xf32>
    %cst_61 = arith.constant 1.000000e+00 : f32
    %182 = vector.broadcast %cst_61 : f32 to vector<8x128xf32>
    %183 = arith.subf %181, %182 : vector<8x128xf32>
    %184 = arith.select %21, %183, %180 : vector<8x128xi1>, vector<8x128xf32>
    %c64_i32_62 = arith.constant 64 : i32
    %185 = tpu.dynamic_rotate %184 by %c64_i32_62 dim 1 : vector<8x128xf32>, i32 -> vector<8x128xf32>
    %c96_i32_63 = arith.constant 96 : i32
    %186 = tpu.dynamic_rotate %184 by %c96_i32_63 dim 1 : vector<8x128xf32>, i32 -> vector<8x128xf32>
    %c32_i32_64 = arith.constant 32 : i32
    %187 = tpu.dynamic_rotate %184 by %c32_i32_64 dim 1 : vector<8x128xf32>, i32 -> vector<8x128xf32>
    %188 = arith.mulf %186, %142 : vector<8x128xf32>
    %189 = arith.mulf %184, %185 : vector<8x128xf32>
    %190 = arith.addf %188, %189 : vector<8x128xf32>
    %191 = math.tanh %190 : vector<8x128xf32>
    %192 = arith.mulf %187, %191 : vector<8x128xf32>
    %193 = vector.extract_strided_slice %192 {offsets = [0, 0], sizes = [8, 32], strides = [1, 1]} : vector<8x128xf32> to vector<8x32xf32>
    %c0_65 = arith.constant 0 : index
    %c64 = arith.constant 64 : index
    %194 = vector.load %arg10[%c0_65, %c64] : memref<8x256xf32, #tpu.memory_space<vmem>>, vector<8x32xf32>
    tpu.vector_store %arg10[%c0_65, %c64], %193 {strides = array<i32>} : memref<8x256xf32, #tpu.memory_space<vmem>>, vector<8x32xf32>,
    %c32_66 = arith.constant 32 : index
    %c0_67 = arith.constant 0 : index
    %195 = vector.load %arg9[%c32_66, %c0_67] : memref<64x128xf32, #tpu.memory_space<vmem>>, vector<8x128xf32>
    %196 = arith.truncf %169 : vector<8x128xf32> to vector<8x128xbf16>
    %cst_68 = arith.constant dense<0.000000e+00> : vector<8x128xf32>
    %197 = tpu.matmul %196, %22, %cst_68 {dimension_numbers = #tpu.dot_dimension_numbers<[1], [0], [0], [1], [0, 0, 1, 1], [], []>} : vector<8x128xbf16>, vector<128x128xbf16>, vector<8x128xf32> -> vector<8x128xf32>
    %198 = arith.addf %195, %197 : vector<8x128xf32>
    %199 = arith.addf %198, %198 : vector<8x128xf32>
    %200 = arith.select %21, %199, %198 : vector<8x128xi1>, vector<8x128xf32>
    %201 = arith.negf %200 : vector<8x128xf32>
    %202 = math.exp %201 : vector<8x128xf32>
    %cst_69 = arith.constant 1.000000e+00 : f32
    %203 = vector.broadcast %cst_69 : f32 to vector<8x128xf32>
    %204 = arith.addf %203, %202 : vector<8x128xf32>
    %205 = arith.divf %203, %204 : vector<8x128xf32>
    %206 = arith.addf %205, %205 : vector<8x128xf32>
    %cst_70 = arith.constant 1.000000e+00 : f32
    %207 = vector.broadcast %cst_70 : f32 to vector<8x128xf32>
    %208 = arith.subf %206, %207 : vector<8x128xf32>
    %209 = arith.select %21, %208, %205 : vector<8x128xi1>, vector<8x128xf32>
    %c64_i32_71 = arith.constant 64 : i32
    %210 = tpu.dynamic_rotate %209 by %c64_i32_71 dim 1 : vector<8x128xf32>, i32 -> vector<8x128xf32>
    %c96_i32_72 = arith.constant 96 : i32
    %211 = tpu.dynamic_rotate %209 by %c96_i32_72 dim 1 : vector<8x128xf32>, i32 -> vector<8x128xf32>
    %c32_i32_73 = arith.constant 32 : i32
    %212 = tpu.dynamic_rotate %209 by %c32_i32_73 dim 1 : vector<8x128xf32>, i32 -> vector<8x128xf32>
    %213 = arith.mulf %211, %167 : vector<8x128xf32>
    %214 = arith.mulf %209, %210 : vector<8x128xf32>
    %215 = arith.addf %213, %214 : vector<8x128xf32>
    %216 = math.tanh %215 : vector<8x128xf32>
    %217 = arith.mulf %212, %216 : vector<8x128xf32>
    %218 = tpu.concatenate %169, %192 in 1 : vector<8x128xf32>, vector<8x128xf32> -> vector<8x256xf32>
    %219 = arith.truncf %218 : vector<8x256xf32> to vector<8x256xbf16>
    %cst_74 = arith.constant dense<0.000000e+00> : vector<8x128xf32>
    %220 = tpu.matmul %219, %23, %cst_74 {dimension_numbers = #tpu.dot_dimension_numbers<[1], [0], [0], [1], [0, 0, 1, 1], [], []>} : vector<8x256xbf16>, vector<256x128xbf16>, vector<8x128xf32> -> vector<8x128xf32>
    %221 = arith.addf %220, %26 : vector<8x128xf32>
    %222 = arith.addf %221, %221 : vector<8x128xf32>
    %223 = arith.select %21, %222, %221 : vector<8x128xi1>, vector<8x128xf32>
    %224 = arith.negf %223 : vector<8x128xf32>
    %225 = math.exp %224 : vector<8x128xf32>
    %cst_75 = arith.constant 1.000000e+00 : f32
    %226 = vector.broadcast %cst_75 : f32 to vector<8x128xf32>
    %227 = arith.addf %226, %225 : vector<8x128xf32>
    %228 = arith.divf %226, %227 : vector<8x128xf32>
    %229 = arith.addf %228, %228 : vector<8x128xf32>
    %cst_76 = arith.constant 1.000000e+00 : f32
    %230 = vector.broadcast %cst_76 : f32 to vector<8x128xf32>
    %231 = arith.subf %229, %230 : vector<8x128xf32>
    %232 = arith.select %21, %231, %228 : vector<8x128xi1>, vector<8x128xf32>
    %c64_i32_77 = arith.constant 64 : i32
    %233 = tpu.dynamic_rotate %232 by %c64_i32_77 dim 1 : vector<8x128xf32>, i32 -> vector<8x128xf32>
    %c96_i32_78 = arith.constant 96 : i32
    %234 = tpu.dynamic_rotate %232 by %c96_i32_78 dim 1 : vector<8x128xf32>, i32 -> vector<8x128xf32>
    %c32_i32_79 = arith.constant 32 : i32
    %235 = tpu.dynamic_rotate %232 by %c32_i32_79 dim 1 : vector<8x128xf32>, i32 -> vector<8x128xf32>
    %236 = arith.mulf %234, %190 : vector<8x128xf32>
    %237 = arith.mulf %232, %233 : vector<8x128xf32>
    %238 = arith.addf %236, %237 : vector<8x128xf32>
    %239 = math.tanh %238 : vector<8x128xf32>
    %240 = arith.mulf %235, %239 : vector<8x128xf32>
    %241 = vector.extract_strided_slice %240 {offsets = [0, 0], sizes = [8, 32], strides = [1, 1]} : vector<8x128xf32> to vector<8x32xf32>
    %c0_80 = arith.constant 0 : index
    %c96 = arith.constant 96 : index
    %242 = vector.load %arg10[%c0_80, %c96] : memref<8x256xf32, #tpu.memory_space<vmem>>, vector<8x32xf32>
    tpu.vector_store %arg10[%c0_80, %c96], %241 {strides = array<i32>} : memref<8x256xf32, #tpu.memory_space<vmem>>, vector<8x32xf32>,
    %c40 = arith.constant 40 : index
    %c0_81 = arith.constant 0 : index
    %243 = vector.load %arg9[%c40, %c0_81] : memref<64x128xf32, #tpu.memory_space<vmem>>, vector<8x128xf32>
    %244 = arith.truncf %217 : vector<8x128xf32> to vector<8x128xbf16>
    %cst_82 = arith.constant dense<0.000000e+00> : vector<8x128xf32>
    %245 = tpu.matmul %244, %22, %cst_82 {dimension_numbers = #tpu.dot_dimension_numbers<[1], [0], [0], [1], [0, 0, 1, 1], [], []>} : vector<8x128xbf16>, vector<128x128xbf16>, vector<8x128xf32> -> vector<8x128xf32>
    %246 = arith.addf %243, %245 : vector<8x128xf32>
    %247 = arith.addf %246, %246 : vector<8x128xf32>
    %248 = arith.select %21, %247, %246 : vector<8x128xi1>, vector<8x128xf32>
    %249 = arith.negf %248 : vector<8x128xf32>
    %250 = math.exp %249 : vector<8x128xf32>
    %cst_83 = arith.constant 1.000000e+00 : f32
    %251 = vector.broadcast %cst_83 : f32 to vector<8x128xf32>
    %252 = arith.addf %251, %250 : vector<8x128xf32>
    %253 = arith.divf %251, %252 : vector<8x128xf32>
    %254 = arith.addf %253, %253 : vector<8x128xf32>
    %cst_84 = arith.constant 1.000000e+00 : f32
    %255 = vector.broadcast %cst_84 : f32 to vector<8x128xf32>
    %256 = arith.subf %254, %255 : vector<8x128xf32>
    %257 = arith.select %21, %256, %253 : vector<8x128xi1>, vector<8x128xf32>
    %c64_i32_85 = arith.constant 64 : i32
    %258 = tpu.dynamic_rotate %257 by %c64_i32_85 dim 1 : vector<8x128xf32>, i32 -> vector<8x128xf32>
    %c96_i32_86 = arith.constant 96 : i32
    %259 = tpu.dynamic_rotate %257 by %c96_i32_86 dim 1 : vector<8x128xf32>, i32 -> vector<8x128xf32>
    %c32_i32_87 = arith.constant 32 : i32
    %260 = tpu.dynamic_rotate %257 by %c32_i32_87 dim 1 : vector<8x128xf32>, i32 -> vector<8x128xf32>
    %261 = arith.mulf %259, %215 : vector<8x128xf32>
    %262 = arith.mulf %257, %258 : vector<8x128xf32>
    %263 = arith.addf %261, %262 : vector<8x128xf32>
    %264 = math.tanh %263 : vector<8x128xf32>
    %265 = arith.mulf %260, %264 : vector<8x128xf32>
    %266 = tpu.concatenate %217, %240 in 1 : vector<8x128xf32>, vector<8x128xf32> -> vector<8x256xf32>
    %267 = arith.truncf %266 : vector<8x256xf32> to vector<8x256xbf16>
    %cst_88 = arith.constant dense<0.000000e+00> : vector<8x128xf32>
    %268 = tpu.matmul %267, %23, %cst_88 {dimension_numbers = #tpu.dot_dimension_numbers<[1], [0], [0], [1], [0, 0, 1, 1], [], []>} : vector<8x256xbf16>, vector<256x128xbf16>, vector<8x128xf32> -> vector<8x128xf32>
    %269 = arith.addf %268, %26 : vector<8x128xf32>
    %270 = arith.addf %269, %269 : vector<8x128xf32>
    %271 = arith.select %21, %270, %269 : vector<8x128xi1>, vector<8x128xf32>
    %272 = arith.negf %271 : vector<8x128xf32>
    %273 = math.exp %272 : vector<8x128xf32>
    %cst_89 = arith.constant 1.000000e+00 : f32
    %274 = vector.broadcast %cst_89 : f32 to vector<8x128xf32>
    %275 = arith.addf %274, %273 : vector<8x128xf32>
    %276 = arith.divf %274, %275 : vector<8x128xf32>
    %277 = arith.addf %276, %276 : vector<8x128xf32>
    %cst_90 = arith.constant 1.000000e+00 : f32
    %278 = vector.broadcast %cst_90 : f32 to vector<8x128xf32>
    %279 = arith.subf %277, %278 : vector<8x128xf32>
    %280 = arith.select %21, %279, %276 : vector<8x128xi1>, vector<8x128xf32>
    %c64_i32_91 = arith.constant 64 : i32
    %281 = tpu.dynamic_rotate %280 by %c64_i32_91 dim 1 : vector<8x128xf32>, i32 -> vector<8x128xf32>
    %c96_i32_92 = arith.constant 96 : i32
    %282 = tpu.dynamic_rotate %280 by %c96_i32_92 dim 1 : vector<8x128xf32>, i32 -> vector<8x128xf32>
    %c32_i32_93 = arith.constant 32 : i32
    %283 = tpu.dynamic_rotate %280 by %c32_i32_93 dim 1 : vector<8x128xf32>, i32 -> vector<8x128xf32>
    %284 = arith.mulf %282, %238 : vector<8x128xf32>
    %285 = arith.mulf %280, %281 : vector<8x128xf32>
    %286 = arith.addf %284, %285 : vector<8x128xf32>
    %287 = math.tanh %286 : vector<8x128xf32>
    %288 = arith.mulf %283, %287 : vector<8x128xf32>
    %289 = vector.extract_strided_slice %288 {offsets = [0, 0], sizes = [8, 32], strides = [1, 1]} : vector<8x128xf32> to vector<8x32xf32>
    %c0_94 = arith.constant 0 : index
    %c128 = arith.constant 128 : index
    %290 = vector.load %arg10[%c0_94, %c128] : memref<8x256xf32, #tpu.memory_space<vmem>>, vector<8x32xf32>
    tpu.vector_store %arg10[%c0_94, %c128], %289 {strides = array<i32>} : memref<8x256xf32, #tpu.memory_space<vmem>>, vector<8x32xf32>,
    %c48 = arith.constant 48 : index
    %c0_95 = arith.constant 0 : index
    %291 = vector.load %arg9[%c48, %c0_95] : memref<64x128xf32, #tpu.memory_space<vmem>>, vector<8x128xf32>
    %292 = arith.truncf %265 : vector<8x128xf32> to vector<8x128xbf16>
    %cst_96 = arith.constant dense<0.000000e+00> : vector<8x128xf32>
    %293 = tpu.matmul %292, %22, %cst_96 {dimension_numbers = #tpu.dot_dimension_numbers<[1], [0], [0], [1], [0, 0, 1, 1], [], []>} : vector<8x128xbf16>, vector<128x128xbf16>, vector<8x128xf32> -> vector<8x128xf32>
    %294 = arith.addf %291, %293 : vector<8x128xf32>
    %295 = arith.addf %294, %294 : vector<8x128xf32>
    %296 = arith.select %21, %295, %294 : vector<8x128xi1>, vector<8x128xf32>
    %297 = arith.negf %296 : vector<8x128xf32>
    %298 = math.exp %297 : vector<8x128xf32>
    %cst_97 = arith.constant 1.000000e+00 : f32
    %299 = vector.broadcast %cst_97 : f32 to vector<8x128xf32>
    %300 = arith.addf %299, %298 : vector<8x128xf32>
    %301 = arith.divf %299, %300 : vector<8x128xf32>
    %302 = arith.addf %301, %301 : vector<8x128xf32>
    %cst_98 = arith.constant 1.000000e+00 : f32
    %303 = vector.broadcast %cst_98 : f32 to vector<8x128xf32>
    %304 = arith.subf %302, %303 : vector<8x128xf32>
    %305 = arith.select %21, %304, %301 : vector<8x128xi1>, vector<8x128xf32>
    %c64_i32_99 = arith.constant 64 : i32
    %306 = tpu.dynamic_rotate %305 by %c64_i32_99 dim 1 : vector<8x128xf32>, i32 -> vector<8x128xf32>
    %c96_i32_100 = arith.constant 96 : i32
    %307 = tpu.dynamic_rotate %305 by %c96_i32_100 dim 1 : vector<8x128xf32>, i32 -> vector<8x128xf32>
    %c32_i32_101 = arith.constant 32 : i32
    %308 = tpu.dynamic_rotate %305 by %c32_i32_101 dim 1 : vector<8x128xf32>, i32 -> vector<8x128xf32>
    %309 = arith.mulf %307, %263 : vector<8x128xf32>
    %310 = arith.mulf %305, %306 : vector<8x128xf32>
    %311 = arith.addf %309, %310 : vector<8x128xf32>
    %312 = math.tanh %311 : vector<8x128xf32>
    %313 = arith.mulf %308, %312 : vector<8x128xf32>
    %314 = tpu.concatenate %265, %288 in 1 : vector<8x128xf32>, vector<8x128xf32> -> vector<8x256xf32>
    %315 = arith.truncf %314 : vector<8x256xf32> to vector<8x256xbf16>
    %cst_102 = arith.constant dense<0.000000e+00> : vector<8x128xf32>
    %316 = tpu.matmul %315, %23, %cst_102 {dimension_numbers = #tpu.dot_dimension_numbers<[1], [0], [0], [1], [0, 0, 1, 1], [], []>} : vector<8x256xbf16>, vector<256x128xbf16>, vector<8x128xf32> -> vector<8x128xf32>
    %317 = arith.addf %316, %26 : vector<8x128xf32>
    %318 = arith.addf %317, %317 : vector<8x128xf32>
    %319 = arith.select %21, %318, %317 : vector<8x128xi1>, vector<8x128xf32>
    %320 = arith.negf %319 : vector<8x128xf32>
    %321 = math.exp %320 : vector<8x128xf32>
    %cst_103 = arith.constant 1.000000e+00 : f32
    %322 = vector.broadcast %cst_103 : f32 to vector<8x128xf32>
    %323 = arith.addf %322, %321 : vector<8x128xf32>
    %324 = arith.divf %322, %323 : vector<8x128xf32>
    %325 = arith.addf %324, %324 : vector<8x128xf32>
    %cst_104 = arith.constant 1.000000e+00 : f32
    %326 = vector.broadcast %cst_104 : f32 to vector<8x128xf32>
    %327 = arith.subf %325, %326 : vector<8x128xf32>
    %328 = arith.select %21, %327, %324 : vector<8x128xi1>, vector<8x128xf32>
    %c64_i32_105 = arith.constant 64 : i32
    %329 = tpu.dynamic_rotate %328 by %c64_i32_105 dim 1 : vector<8x128xf32>, i32 -> vector<8x128xf32>
    %c96_i32_106 = arith.constant 96 : i32
    %330 = tpu.dynamic_rotate %328 by %c96_i32_106 dim 1 : vector<8x128xf32>, i32 -> vector<8x128xf32>
    %c32_i32_107 = arith.constant 32 : i32
    %331 = tpu.dynamic_rotate %328 by %c32_i32_107 dim 1 : vector<8x128xf32>, i32 -> vector<8x128xf32>
    %332 = arith.mulf %330, %286 : vector<8x128xf32>
    %333 = arith.mulf %328, %329 : vector<8x128xf32>
    %334 = arith.addf %332, %333 : vector<8x128xf32>
    %335 = math.tanh %334 : vector<8x128xf32>
    %336 = arith.mulf %331, %335 : vector<8x128xf32>
    %337 = vector.extract_strided_slice %336 {offsets = [0, 0], sizes = [8, 32], strides = [1, 1]} : vector<8x128xf32> to vector<8x32xf32>
    %c0_108 = arith.constant 0 : index
    %c160 = arith.constant 160 : index
    %338 = vector.load %arg10[%c0_108, %c160] : memref<8x256xf32, #tpu.memory_space<vmem>>, vector<8x32xf32>
    tpu.vector_store %arg10[%c0_108, %c160], %337 {strides = array<i32>} : memref<8x256xf32, #tpu.memory_space<vmem>>, vector<8x32xf32>,
    %c56 = arith.constant 56 : index
    %c0_109 = arith.constant 0 : index
    %339 = vector.load %arg9[%c56, %c0_109] : memref<64x128xf32, #tpu.memory_space<vmem>>, vector<8x128xf32>
    %340 = arith.truncf %313 : vector<8x128xf32> to vector<8x128xbf16>
    %cst_110 = arith.constant dense<0.000000e+00> : vector<8x128xf32>
    %341 = tpu.matmul %340, %22, %cst_110 {dimension_numbers = #tpu.dot_dimension_numbers<[1], [0], [0], [1], [0, 0, 1, 1], [], []>} : vector<8x128xbf16>, vector<128x128xbf16>, vector<8x128xf32> -> vector<8x128xf32>
    %342 = arith.addf %339, %341 : vector<8x128xf32>
    %343 = arith.addf %342, %342 : vector<8x128xf32>
    %344 = arith.select %21, %343, %342 : vector<8x128xi1>, vector<8x128xf32>
    %345 = arith.negf %344 : vector<8x128xf32>
    %346 = math.exp %345 : vector<8x128xf32>
    %cst_111 = arith.constant 1.000000e+00 : f32
    %347 = vector.broadcast %cst_111 : f32 to vector<8x128xf32>
    %348 = arith.addf %347, %346 : vector<8x128xf32>
    %349 = arith.divf %347, %348 : vector<8x128xf32>
    %350 = arith.addf %349, %349 : vector<8x128xf32>
    %cst_112 = arith.constant 1.000000e+00 : f32
    %351 = vector.broadcast %cst_112 : f32 to vector<8x128xf32>
    %352 = arith.subf %350, %351 : vector<8x128xf32>
    %353 = arith.select %21, %352, %349 : vector<8x128xi1>, vector<8x128xf32>
    %c64_i32_113 = arith.constant 64 : i32
    %354 = tpu.dynamic_rotate %353 by %c64_i32_113 dim 1 : vector<8x128xf32>, i32 -> vector<8x128xf32>
    %c96_i32_114 = arith.constant 96 : i32
    %355 = tpu.dynamic_rotate %353 by %c96_i32_114 dim 1 : vector<8x128xf32>, i32 -> vector<8x128xf32>
    %c32_i32_115 = arith.constant 32 : i32
    %356 = tpu.dynamic_rotate %353 by %c32_i32_115 dim 1 : vector<8x128xf32>, i32 -> vector<8x128xf32>
    %357 = arith.mulf %355, %311 : vector<8x128xf32>
    %358 = arith.mulf %353, %354 : vector<8x128xf32>
    %359 = arith.addf %357, %358 : vector<8x128xf32>
    %360 = math.tanh %359 : vector<8x128xf32>
    %361 = arith.mulf %356, %360 : vector<8x128xf32>
    %362 = tpu.concatenate %313, %336 in 1 : vector<8x128xf32>, vector<8x128xf32> -> vector<8x256xf32>
    %363 = arith.truncf %362 : vector<8x256xf32> to vector<8x256xbf16>
    %cst_116 = arith.constant dense<0.000000e+00> : vector<8x128xf32>
    %364 = tpu.matmul %363, %23, %cst_116 {dimension_numbers = #tpu.dot_dimension_numbers<[1], [0], [0], [1], [0, 0, 1, 1], [], []>} : vector<8x256xbf16>, vector<256x128xbf16>, vector<8x128xf32> -> vector<8x128xf32>
    %365 = arith.addf %364, %26 : vector<8x128xf32>
    %366 = arith.addf %365, %365 : vector<8x128xf32>
    %367 = arith.select %21, %366, %365 : vector<8x128xi1>, vector<8x128xf32>
    %368 = arith.negf %367 : vector<8x128xf32>
    %369 = math.exp %368 : vector<8x128xf32>
    %cst_117 = arith.constant 1.000000e+00 : f32
    %370 = vector.broadcast %cst_117 : f32 to vector<8x128xf32>
    %371 = arith.addf %370, %369 : vector<8x128xf32>
    %372 = arith.divf %370, %371 : vector<8x128xf32>
    %373 = arith.addf %372, %372 : vector<8x128xf32>
    %cst_118 = arith.constant 1.000000e+00 : f32
    %374 = vector.broadcast %cst_118 : f32 to vector<8x128xf32>
    %375 = arith.subf %373, %374 : vector<8x128xf32>
    %376 = arith.select %21, %375, %372 : vector<8x128xi1>, vector<8x128xf32>
    %c64_i32_119 = arith.constant 64 : i32
    %377 = tpu.dynamic_rotate %376 by %c64_i32_119 dim 1 : vector<8x128xf32>, i32 -> vector<8x128xf32>
    %c96_i32_120 = arith.constant 96 : i32
    %378 = tpu.dynamic_rotate %376 by %c96_i32_120 dim 1 : vector<8x128xf32>, i32 -> vector<8x128xf32>
    %c32_i32_121 = arith.constant 32 : i32
    %379 = tpu.dynamic_rotate %376 by %c32_i32_121 dim 1 : vector<8x128xf32>, i32 -> vector<8x128xf32>
    %380 = arith.mulf %378, %334 : vector<8x128xf32>
    %381 = arith.mulf %376, %377 : vector<8x128xf32>
    %382 = arith.addf %380, %381 : vector<8x128xf32>
    %383 = math.tanh %382 : vector<8x128xf32>
    %384 = arith.mulf %379, %383 : vector<8x128xf32>
    %385 = vector.extract_strided_slice %384 {offsets = [0, 0], sizes = [8, 32], strides = [1, 1]} : vector<8x128xf32> to vector<8x32xf32>
    %c0_122 = arith.constant 0 : index
    %c192 = arith.constant 192 : index
    %386 = vector.load %arg10[%c0_122, %c192] : memref<8x256xf32, #tpu.memory_space<vmem>>, vector<8x32xf32>
    tpu.vector_store %arg10[%c0_122, %c192], %385 {strides = array<i32>} : memref<8x256xf32, #tpu.memory_space<vmem>>, vector<8x32xf32>,
    %387 = tpu.concatenate %361, %384 in 1 : vector<8x128xf32>, vector<8x128xf32> -> vector<8x256xf32>
    %388 = arith.truncf %387 : vector<8x256xf32> to vector<8x256xbf16>
    %cst_123 = arith.constant dense<0.000000e+00> : vector<8x128xf32>
    %389 = tpu.matmul %388, %23, %cst_123 {dimension_numbers = #tpu.dot_dimension_numbers<[1], [0], [0], [1], [0, 0, 1, 1], [], []>} : vector<8x256xbf16>, vector<256x128xbf16>, vector<8x128xf32> -> vector<8x128xf32>
    %390 = arith.addf %389, %26 : vector<8x128xf32>
    %391 = arith.addf %390, %390 : vector<8x128xf32>
    %392 = arith.select %21, %391, %390 : vector<8x128xi1>, vector<8x128xf32>
    %393 = arith.negf %392 : vector<8x128xf32>
    %394 = math.exp %393 : vector<8x128xf32>
    %cst_124 = arith.constant 1.000000e+00 : f32
    %395 = vector.broadcast %cst_124 : f32 to vector<8x128xf32>
    %396 = arith.addf %395, %394 : vector<8x128xf32>
    %397 = arith.divf %395, %396 : vector<8x128xf32>
    %398 = arith.addf %397, %397 : vector<8x128xf32>
    %cst_125 = arith.constant 1.000000e+00 : f32
    %399 = vector.broadcast %cst_125 : f32 to vector<8x128xf32>
    %400 = arith.subf %398, %399 : vector<8x128xf32>
    %401 = arith.select %21, %400, %397 : vector<8x128xi1>, vector<8x128xf32>
    %c64_i32_126 = arith.constant 64 : i32
    %402 = tpu.dynamic_rotate %401 by %c64_i32_126 dim 1 : vector<8x128xf32>, i32 -> vector<8x128xf32>
    %c96_i32_127 = arith.constant 96 : i32
    %403 = tpu.dynamic_rotate %401 by %c96_i32_127 dim 1 : vector<8x128xf32>, i32 -> vector<8x128xf32>
    %c32_i32_128 = arith.constant 32 : i32
    %404 = tpu.dynamic_rotate %401 by %c32_i32_128 dim 1 : vector<8x128xf32>, i32 -> vector<8x128xf32>
    %405 = arith.mulf %403, %382 : vector<8x128xf32>
    %406 = arith.mulf %401, %402 : vector<8x128xf32>
    %407 = arith.addf %405, %406 : vector<8x128xf32>
    %408 = math.tanh %407 : vector<8x128xf32>
    %409 = arith.mulf %404, %408 : vector<8x128xf32>
    %410 = vector.extract_strided_slice %409 {offsets = [0, 0], sizes = [8, 32], strides = [1, 1]} : vector<8x128xf32> to vector<8x32xf32>
    %c0_129 = arith.constant 0 : index
    %c224 = arith.constant 224 : index
    %411 = vector.load %arg10[%c0_129, %c224] : memref<8x256xf32, #tpu.memory_space<vmem>>, vector<8x32xf32>
    tpu.vector_store %arg10[%c0_129, %c224], %410 {strides = array<i32>} : memref<8x256xf32, #tpu.memory_space<vmem>>, vector<8x32xf32>,
    %c0_130 = arith.constant 0 : index
    %c0_131 = arith.constant 0 : index
    %412 = vector.load %arg10[%c0_130, %c0_131] : memref<8x256xf32, #tpu.memory_space<vmem>>, vector<8x256xf32>
    %413 = arith.truncf %412 : vector<8x256xf32> to vector<8x256xbf16>
    %c0_132 = arith.constant 0 : index
    %c0_133 = arith.constant 0 : index
    %414 = vector.load %arg6[%c0_132, %c0_133] : memref<256x128xbf16, #tpu.memory_space<vmem>>, vector<256x128xbf16>
    %cst_134 = arith.constant dense<0.000000e+00> : vector<8x128xf32>
    %415 = tpu.matmul %413, %414, %cst_134 {dimension_numbers = #tpu.dot_dimension_numbers<[1], [0], [0], [1], [0, 0, 1, 1], [], []>} : vector<8x256xbf16>, vector<256x128xbf16>, vector<8x128xf32> -> vector<8x128xf32>
    %c0_135 = arith.constant 0 : index
    %c0_136 = arith.constant 0 : index
    %416 = vector.load %arg7[%c0_135, %c0_136] : memref<1x128xf32, #tpu.memory_space<vmem>>, vector<1x128xf32>
    %417 = vector.shape_cast %416 : vector<1x128xf32> to vector<1x128xf32>
    %418 = vector.broadcast %417 : vector<1x128xf32> to vector<8x128xf32>
    %419 = arith.addf %415, %418 : vector<8x128xf32>
    %c0_137 = arith.constant 0 : index
    %c0_138 = arith.constant 0 : index
    %420 = vector.load %arg8[%c0_137, %c0_138] : memref<8x128xf32, #tpu.memory_space<vmem>>, vector<8x128xf32>
    tpu.vector_store %arg8[%c0_137, %c0_138], %419 {strides = array<i32>} : memref<8x128xf32, #tpu.memory_space<vmem>>, vector<8x128xf32>,
    return
  }
}

</mosaic_0001>

<llo_original>
// kernel: tpu_custom_call.1
$region0: #{tpu_custom_call.1}
  #allocation0 [shape = 'u32[]', space=smem, size = 0x4, offset = 0x4, fixed_abs, tag = 'smem constant byte address 0x4 - core index']
  #allocation1 [shape = 'u32[144,128]{1,0:T(1,128)}', space=vmem, size = 0x12000, scoped, tag = 'internal scratch']
  #allocation2 [shape = 'f32[64,128]{1,0:T(8,128)}', space=vmem, size = 0x8000, scoped, tag = 'scratch operand']
  #allocation3 [shape = 'f32[8,256]{1,0:T(8,128)}', space=vmem, size = 0x2000, scoped, tag = 'scratch operand']
  %s0 = inlined_call_operand.vmem [shape: s32[64,1], index: 0, kind: input, shape index: {}]
  %s1 = inlined_call_operand.hbm [shape: bf16[32,128], index: 1, kind: input, shape index: {}]
  %s2 = inlined_call_operand.vmem [shape: bf16[128,128], index: 2, kind: input, shape index: {}]
  %s3 = inlined_call_operand.vmem [shape: f32[1,128], index: 3, kind: input, shape index: {}]
  %s4 = inlined_call_operand.hbm [shape: bf16[256,128], index: 4, kind: input, shape index: {}]
  %s5 = inlined_call_operand.vmem [shape: f32[1,128], index: 5, kind: input, shape index: {}]
  %s6 = inlined_call_operand.hbm [shape: bf16[256,128], index: 6, kind: input, shape index: {}]
  %s7 = inlined_call_operand.vmem [shape: f32[1,128], index: 7, kind: input, shape index: {}]
  %s8 = inlined_call_operand.hbm [shape: f32[8,128], index: 8, kind: output, shape index: {}]
  %s9 = sld [smem:[#allocation0]]
  $region54: #{tpu_custom_call.1} parent=0
    _
  %s11 = ssub.s32 1, %s9
  %s12 = scalar_select 0, %s11, %s9
  $region1: #{tpu_custom_call.1} parent=0
    #allocation4 [shape = 'u8[8192]{0}', space=vmem, size = 0x2000, scoped, tag = 'input window, operand 1, single buffered']
    #allocation5 [shape = 's32[1]{0}', space=sflag, size = 0x4, scoped, tag = 'scoped memory for tpu_custom_call.1']
    #allocation6 [shape = 's32[1]{0}', space=sflag, size = 0x4, scoped, tag = 'scoped memory for tpu_custom_call.1']
    #allocation7 [shape = 'u8[65536]{0}', space=vmem, size = 0x10000, scoped, tag = 'input window, operand 4, single buffered']
    #allocation8 [shape = 's32[1]{0}', space=sflag, size = 0x4, scoped, tag = 'scoped memory for tpu_custom_call.1']
    #allocation9 [shape = 'u8[65536]{0}', space=vmem, size = 0x10000, scoped, tag = 'input window, operand 6, single buffered']
    #allocation10 [shape = 'u8[4096]{0}', space=vmem, size = 0x1000, scoped, tag = 'output window, operand 0, single buffered']
    %13 = vsyncpa [#allocation5], 0
    %14 = vsyncpa [#allocation8], 0
    %15 = vsyncpa [#allocation6], 0
    // Predicated region
    $region2: #{tpu_custom_call.1} parent=1 // pred_check
      _
    $region3: #{tpu_custom_call.1} parent=1 // pred_check_branch
      %17 = sbr.rel (0) target = $region5
    $region4: #{tpu_custom_call.1} parent=1 // pred_region
      _
    $region5: #{tpu_custom_call.1} parent=1 // pred_fallthru
      _
    // Predicated region
    $region6: #{tpu_custom_call.1} parent=1 // pred_check
      _
    $region7: #{tpu_custom_call.1} parent=1 // pred_check_branch
      %19 = sbr.rel (0) target = $region9
    $region8: #{tpu_custom_call.1} parent=1 // pred_region
      %s21 = ssub.s32 256, 256
      %22 = vsyncadd [#allocation5], %s21
      %s23 = sshll.u32 [#allocation4], 4
      %s24 = int_to_ptr.vmem [resolvable:$true] %s23
      %29 = dma.hbm_to_vmem [thread:$0]  %s1, 256, %s24, [#allocation5], 64, 64, 4
    $region9: #{tpu_custom_call.1} parent=1 // pred_fallthru
      _
    // Predicated region
    $region10: #{tpu_custom_call.1} parent=1 // pred_check
      _
    $region11: #{tpu_custom_call.1} parent=1 // pred_check_branch
      %31 = sbr.rel (0) target = $region13
    $region12: #{tpu_custom_call.1} parent=1 // pred_region
      _
    $region13: #{tpu_custom_call.1} parent=1 // pred_fallthru
      _
    // Predicated region
    $region14: #{tpu_custom_call.1} parent=1 // pred_check
      _
    $region15: #{tpu_custom_call.1} parent=1 // pred_check_branch
      %33 = sbr.rel (0) target = $region17
    $region16: #{tpu_custom_call.1} parent=1 // pred_region
      _
    $region17: #{tpu_custom_call.1} parent=1 // pred_fallthru
      _
    // Predicated region
    $region18: #{tpu_custom_call.1} parent=1 // pred_check
      _
    $region19: #{tpu_custom_call.1} parent=1 // pred_check_branch
      %35 = sbr.rel (0) target = $region21
    $region20: #{tpu_custom_call.1} parent=1 // pred_region
      %s37 = ssub.s32 2048, 2048
      %38 = vsyncadd [#allocation8], %s37
      %s39 = sshll.u32 [#allocation7], 4
      %s40 = int_to_ptr.vmem [resolvable:$true] %s39
      %45 = dma.hbm_to_vmem [thread:$0]  %s4, 2048, %s40, [#allocation8], 64, 64, 4
    $region21: #{tpu_custom_call.1} parent=1 // pred_fallthru
      _
    // Predicated region
    $region22: #{tpu_custom_call.1} parent=1 // pred_check
      _
    $region23: #{tpu_custom_call.1} parent=1 // pred_check_branch
      %47 = sbr.rel (0) target = $region25
    $region24: #{tpu_custom_call.1} parent=1 // pred_region
      _
    $region25: #{tpu_custom_call.1} parent=1 // pred_fallthru
      _
    // Predicated region
    $region26: #{tpu_custom_call.1} parent=1 // pred_check
      _
    $region27: #{tpu_custom_call.1} parent=1 // pred_check_branch
      %49 = sbr.rel (0) target = $region29
    $region28: #{tpu_custom_call.1} parent=1 // pred_region
      %s51 = ssub.s32 2048, 2048
      %52 = vsyncadd [#allocation8], %s51
      %s53 = sshll.u32 [#allocation9], 4
      %s54 = int_to_ptr.vmem [resolvable:$true] %s53
      %59 = dma.hbm_to_vmem [thread:$0]  %s6, 2048, %s54, [#allocation8], 64, 64, 4
    $region29: #{tpu_custom_call.1} parent=1 // pred_fallthru
      _
    // Predicated region
    $region30: #{tpu_custom_call.1} parent=1 // pred_check
      _
    $region31: #{tpu_custom_call.1} parent=1 // pred_check_branch
      %61 = sbr.rel (0) target = $region33
    $region32: #{tpu_custom_call.1} parent=1 // pred_region
      _
    $region33: #{tpu_custom_call.1} parent=1 // pred_fallthru
      _
    // Predicated region
    $region34: #{tpu_custom_call.1} parent=1 // pred_check
      _
    $region35: #{tpu_custom_call.1} parent=1 // pred_check_branch
      %63 = sbr.rel (0) target = $region37
    $region36: #{tpu_custom_call.1} parent=1 // pred_region
      %64 = dma.done [#allocation5], 256
    $region37: #{tpu_custom_call.1} parent=1 // pred_fallthru
      _
    // Predicated region
    $region38: #{tpu_custom_call.1} parent=1 // pred_check
      _
    $region39: #{tpu_custom_call.1} parent=1 // pred_check_branch
      %66 = sbr.rel (0) target = $region41
    $region40: #{tpu_custom_call.1} parent=1 // pred_region
      %67 = dma.done [#allocation8], 2048
    $region41: #{tpu_custom_call.1} parent=1 // pred_fallthru
      _
    // Predicated region
    $region42: #{tpu_custom_call.1} parent=1 // pred_check
      _
    $region43: #{tpu_custom_call.1} parent=1 // pred_check_branch
      %69 = sbr.rel (0) target = $region45
    $region44: #{tpu_custom_call.1} parent=1 // pred_region
      %70 = dma.done [#allocation8], 2048
    $region45: #{tpu_custom_call.1} parent=1 // pred_fallthru
      _
    %v72 = vlaneseq
    %v73 = vand.u32 %v72, 127
    %v74 = vld [vmem:[%s0] sm:$0xff]
    %v75 = vld [vmem:[%s0 + $0x8] sm:$0xff]
    %v76 = vld [vmem:[%s0 + $0x10] sm:$0xff]
    %v77 = vld [vmem:[%s0 + $0x18] sm:$0xff]
    %v78 = vld [vmem:[%s0 + $0x20] sm:$0xff]
    %v79 = vld [vmem:[%s0 + $0x28] sm:$0xff]
    %v80 = vld [vmem:[%s0 + $0x30] sm:$0xff]
    %v81 = vld [vmem:[%s0 + $0x38] sm:$0xff]
    %82 = vset.pattern.permute.xlu0 0
    %83 = vperm.xlu0 %82, %v74
    %v84 = vpop.permute.xlu0 %83
    %85 = vset.pattern.permute.xlu0 0
    %86 = vperm.xlu0 %85, %v75
    %v87 = vpop.permute.xlu0 %86
    %88 = vset.pattern.permute.xlu0 0
    %89 = vperm.xlu0 %88, %v76
    %v90 = vpop.permute.xlu0 %89
    %91 = vset.pattern.permute.xlu0 0
    %92 = vperm.xlu0 %91, %v77
    %v93 = vpop.permute.xlu0 %92
    %94 = vset.pattern.permute.xlu0 0
    %95 = vperm.xlu0 %94, %v78
    %v96 = vpop.permute.xlu0 %95
    %97 = vset.pattern.permute.xlu0 0
    %98 = vperm.xlu0 %97, %v79
    %v99 = vpop.permute.xlu0 %98
    %100 = vset.pattern.permute.xlu0 0
    %101 = vperm.xlu0 %100, %v80
    %v102 = vpop.permute.xlu0 %101
    %103 = vset.pattern.permute.xlu0 0
    %104 = vperm.xlu0 %103, %v81
    %v105 = vpop.permute.xlu0 %104
    %vm106 = vcmp.eq.s32.totalorder %v73, %v84
    %vm107 = vcmp.eq.s32.totalorder %v73, %v87
    %vm108 = vcmp.eq.s32.totalorder %v73, %v90
    %vm109 = vcmp.eq.s32.totalorder %v73, %v93
    %vm110 = vcmp.eq.s32.totalorder %v73, %v96
    %vm111 = vcmp.eq.s32.totalorder %v73, %v99
    %vm112 = vcmp.eq.s32.totalorder %v73, %v102
    %vm113 = vcmp.eq.s32.totalorder %v73, %v105
    %v114 = vsel %vm106, 1.0, 0.0
    %v115 = vsel %vm107, 1.0, 0.0
    %v116 = vsel %vm108, 1.0, 0.0
    %v117 = vsel %vm109, 1.0, 0.0
    %v118 = vsel %vm110, 1.0, 0.0
    %v119 = vsel %vm111, 1.0, 0.0
    %v120 = vsel %vm112, 1.0, 0.0
    %v121 = vsel %vm113, 1.0, 0.0
    %v122 = vpack.c.bf16 %v115, %v114
    %v123 = vpack.c.bf16 %v117, %v116
    %v124 = vpack.c.bf16 %v119, %v118
    %v125 = vpack.c.bf16 %v121, %v120
    %v126 = vld [vmem:[#allocation4] sm:$0xf]
    %v127 = vld [vmem:[#allocation4 + $0x4] sm:$0xf]
    %v128 = vld [vmem:[#allocation4 + $0x8] sm:$0xf]
    %v129 = vld [vmem:[#allocation4 + $0xc] sm:$0xf]
    %v130 = vld [vmem:[%s3] sm:$0x1]
    %v132 = vlaneseq
    %v133 = vshrl.u32 %v132, 7
    %v134 = vsub.s32 0, %v133
    %v135 = vrot.slane %v130, %v134
    %v141 = vunpack.c.l.b16 %v126
    %v142 = vunpack.c.l.b16 %v127
    %v143 = vunpack.c.l.b16 %v128
    %v144 = vunpack.c.l.b16 %v129
    %v145 = vpack.c.b16 %v142, %v141
    %v146 = vpack.c.b16 %v144, %v143
    %vm149 = vcmask 261120
    %v151 = vsel %vm149, %v122, 0
    %v154 = vsel %vm149, %v123, 0
    %v157 = vsel %vm149, %v124, 0
    %v160 = vsel %vm149, %v125, 0
    %162 = vmatprep.subr.bf16.mxu0 0
    %163 = vmatpush1.bf16.msra.mxu0 0
    %164 = vmatprep.subr.bf16.mxu0 0
    %165 = vmatpush1.bf16.msra.mxu0 0
    %166 = vmatprep.subr.bf16.mxu0 0
    %167 = vmatpush1.bf16.msra.mxu0 0
    %168 = vmatprep.subr.bf16.mxu0 0
    %169 = vmatpush1.bf16.msra.mxu0 0
    %170 = vmatprep.subr.bf16.mxu0 0
    %171 = vmatpush1.bf16.msra.mxu0 0
    %172 = vmatprep.subr.bf16.mxu0 0
    %173 = vmatpush1.bf16.msra.mxu0 0
    %174 = vmatprep.subr.bf16.mxu0 0
    %175 = vmatpush1.bf16.msra.mxu0 %v146
    %176 = vmatprep.subr.bf16.mxu0 0
    %177 = vmatpush1.bf16.msra.mxu0 %v145
    %178 = vmatprep.subr.bf16.mxu0 0
    %179 = vmatpush2.bf16.msra.mxu0 0
    %180 = vmatprep.subr.bf16.mxu0 0
    %181 = vmatpush2.bf16.msra.mxu0 0
    %182 = vmatprep.subr.bf16.mxu0 0
    %183 = vmatpush2.bf16.msra.mxu0 0
    %184 = vmatprep.subr.bf16.mxu0 0
    %185 = vmatpush2.bf16.msra.mxu0 0
    %186 = vmatprep.subr.bf16.mxu0 0
    %187 = vmatpush2.bf16.msra.mxu0 0
    %188 = vmatprep.subr.bf16.mxu0 0
    %189 = vmatpush2.bf16.msra.mxu0 0
    %190 = vmatprep.subr.bf16.mxu0 0
    %191 = vmatpush2.bf16.msra.mxu0 0
    %192 = vmatprep.subr.bf16.mxu0 0
    %193 = vmatpush2.bf16.msra.mxu0 0
    %194 = vmatprep.mubr.bf16.mxu0 0
    %195 = vmatmul.mubr.bf16.gmra.mxu0 %v151
    %v196 = vpop.f32.mrf.mxu0
    %v197 = vadd.f32 %v135, %v196
    %v198 = vpop.f32.mrf.mxu0
    %v199 = vpop.f32.mrf.mxu0
    %v200 = vadd.f32 %v135, %v199
    %v201 = vpop.f32.mrf.mxu0
    %202 = vmatprep.mubr.bf16.mxu0 0
    %203 = vmatmul.mubr.bf16.gmra.mxu0 %v154
    %v204 = vpop.f32.mrf.mxu0
    %v205 = vadd.f32 %v135, %v204
    %v206 = vpop.f32.mrf.mxu0
    %v207 = vpop.f32.mrf.mxu0
    %v208 = vadd.f32 %v135, %v207
    %v209 = vpop.f32.mrf.mxu0
    %210 = vmatprep.mubr.bf16.mxu0 0
    %211 = vmatmul.mubr.bf16.gmra.mxu0 %v157
    %v212 = vpop.f32.mrf.mxu0
    %v213 = vadd.f32 %v135, %v212
    %v214 = vpop.f32.mrf.mxu0
    %v215 = vpop.f32.mrf.mxu0
    %v216 = vadd.f32 %v135, %v215
    %v217 = vpop.f32.mrf.mxu0
    %218 = vmatprep.mubr.bf16.mxu0 0
    %219 = vmatmul.mubr.bf16.gmra.mxu0 %v160
    %v220 = vpop.f32.mrf.mxu0
    %v221 = vadd.f32 %v135, %v220
    %v222 = vpop.f32.mrf.mxu0
    %v223 = vpop.f32.mrf.mxu0
    %v224 = vadd.f32 %v135, %v223
    %v225 = vpop.f32.mrf.mxu0
    %226 = vdwg.mxu0
    %227 = vst [vmem:[#allocation2] sm:$0xff] %v197
    %228 = vst [vmem:[#allocation2 + $0x8] sm:$0xff] %v200
    %229 = vst [vmem:[#allocation2 + $0x10] sm:$0xff] %v205
    %230 = vst [vmem:[#allocation2 + $0x18] sm:$0xff] %v208
    %231 = vst [vmem:[#allocation2 + $0x20] sm:$0xff] %v213
    %232 = vst [vmem:[#allocation2 + $0x28] sm:$0xff] %v216
    %233 = vst [vmem:[#allocation2 + $0x30] sm:$0xff] %v221
    %234 = vst [vmem:[#allocation2 + $0x38] sm:$0xff] %v224
    %vm235 = vcmp.ge.s32.totalorder %v73, 64
    %vm236 = vcmp.lt.s32.totalorder %v73, 96
    %vm237 = vmand %vm235, %vm236
    %v238 = vld [vmem:[%s2] sm:$0xf]
    %v239 = vld [vmem:[%s2 + $0x4] sm:$0xf]
    %v240 = vld [vmem:[%s2 + $0x8] sm:$0xf]
    %v241 = vld [vmem:[%s2 + $0xc] sm:$0xf]
    %v242 = vld [vmem:[%s2 + $0x10] sm:$0xf]
    %v243 = vld [vmem:[%s2 + $0x14] sm:$0xf]
    %v244 = vld [vmem:[%s2 + $0x18] sm:$0xf]
    %v245 = vld [vmem:[%s2 + $0x1c] sm:$0xf]
    %v246 = vld [vmem:[%s2 + $0x20] sm:$0xf]
    %v247 = vld [vmem:[%s2 + $0x24] sm:$0xf]
    %v248 = vld [vmem:[%s2 + $0x28] sm:$0xf]
    %v249 = vld [vmem:[%s2 + $0x2c] sm:$0xf]
    %v250 = vld [vmem:[%s2 + $0x30] sm:$0xf]
    %v251 = vld [vmem:[%s2 + $0x34] sm:$0xf]
    %v252 = vld [vmem:[%s2 + $0x38] sm:$0xf]
    %v253 = vld [vmem:[%s2 + $0x3c] sm:$0xf]
    %v254 = vld [vmem:[#allocation7] sm:$0xf]
    %v255 = vld [vmem:[#allocation7 + $0x4] sm:$0xf]
    %v256 = vld [vmem:[#allocation7 + $0x8] sm:$0xf]
    %v257 = vld [vmem:[#allocation7 + $0xc] sm:$0xf]
    %v258 = vld [vmem:[#allocation7 + $0x10] sm:$0xf]
    %v259 = vld [vmem:[#allocation7 + $0x14] sm:$0xf]
    %v260 = vld [vmem:[#allocation7 + $0x18] sm:$0xf]
    %v261 = vld [vmem:[#allocation7 + $0x1c] sm:$0xf]
    %v262 = vld [vmem:[#allocation7 + $0x20] sm:$0xf]
    %v263 = vld [vmem:[#allocation7 + $0x24] sm:$0xf]
    %v264 = vld [vmem:[#allocation7 + $0x28] sm:$0xf]
    %v265 = vld [vmem:[#allocation7 + $0x2c] sm:$0xf]
    %v266 = vld [vmem:[#allocation7 + $0x30] sm:$0xf]
    %v267 = vld [vmem:[#allocation7 + $0x34] sm:$0xf]
    %v268 = vld [vmem:[#allocation7 + $0x38] sm:$0xf]
    %v269 = vld [vmem:[#allocation7 + $0x3c] sm:$0xf]
    %v270 = vld [vmem:[#allocation7 + $0x40] sm:$0xf]
    %v271 = vld [vmem:[#allocation7 + $0x44] sm:$0xf]
    %v272 = vld [vmem:[#allocation7 + $0x48] sm:$0xf]
    %v273 = vld [vmem:[#allocation7 + $0x4c] sm:$0xf]
    %v274 = vld [vmem:[#allocation7 + $0x50] sm:$0xf]
    %v275 = vld [vmem:[#allocation7 + $0x54] sm:$0xf]
    %v276 = vld [vmem:[#allocation7 + $0x58] sm:$0xf]
    %v277 = vld [vmem:[#allocation7 + $0x5c] sm:$0xf]
    %v278 = vld [vmem:[#allocation7 + $0x60] sm:$0xf]
    %v279 = vld [vmem:[#allocation7 + $0x64] sm:$0xf]
    %v280 = vld [vmem:[#allocation7 + $0x68] sm:$0xf]
    %v281 = vld [vmem:[#allocation7 + $0x6c] sm:$0xf]
    %v282 = vld [vmem:[#allocation7 + $0x70] sm:$0xf]
    %v283 = vld [vmem:[#allocation7 + $0x74] sm:$0xf]
    %v284 = vld [vmem:[#allocation7 + $0x78] sm:$0xf]
    %v285 = vld [vmem:[#allocation7 + $0x7c] sm:$0xf]
    %v286 = vld [vmem:[%s5] sm:$0x1]
    %v288 = vlaneseq
    %v289 = vshrl.u32 %v288, 7
    %v290 = vsub.s32 0, %v289
    %v291 = vrot.slane %v286, %v290
    %v293 = vld [vmem:[#allocation2] sm:$0xff]
    %v310 = vunpack.c.l.b16 %v238
    %v311 = vunpack.c.l.b16 %v239
    %v312 = vunpack.c.l.b16 %v240
    %v313 = vunpack.c.l.b16 %v241
    %v314 = vunpack.c.l.b16 %v242
    %v315 = vunpack.c.l.b16 %v243
    %v316 = vunpack.c.l.b16 %v244
    %v317 = vunpack.c.l.b16 %v245
    %v318 = vunpack.c.l.b16 %v246
    %v319 = vunpack.c.l.b16 %v247
    %v320 = vunpack.c.l.b16 %v248
    %v321 = vunpack.c.l.b16 %v249
    %v322 = vunpack.c.l.b16 %v250
    %v323 = vunpack.c.l.b16 %v251
    %v324 = vunpack.c.l.b16 %v252
    %v325 = vunpack.c.l.b16 %v253
    %v326 = vpack.c.b16 %v311, %v310
    %v327 = vpack.c.b16 %v313, %v312
    %v328 = vpack.c.b16 %v315, %v314
    %v329 = vpack.c.b16 %v317, %v316
    %v330 = vpack.c.b16 %v319, %v318
    %v331 = vpack.c.b16 %v321, %v320
    %v332 = vpack.c.b16 %v323, %v322
    %v333 = vpack.c.b16 %v325, %v324
    %342 = vmatprep.subr.bf16.mxu0 0
    %343 = vmatpush1.bf16.msra.mxu0 %v333
    %344 = vmatprep.subr.bf16.mxu0 0
    %345 = vmatpush1.bf16.msra.mxu0 %v332
    %346 = vmatprep.subr.bf16.mxu0 0
    %347 = vmatpush1.bf16.msra.mxu0 %v331
    %348 = vmatprep.subr.bf16.mxu0 0
    %349 = vmatpush1.bf16.msra.mxu0 %v330
    %350 = vmatprep.subr.bf16.mxu0 0
    %351 = vmatpush1.bf16.msra.mxu0 %v329
    %352 = vmatprep.subr.bf16.mxu0 0
    %353 = vmatpush1.bf16.msra.mxu0 %v328
    %354 = vmatprep.subr.bf16.mxu0 0
    %355 = vmatpush1.bf16.msra.mxu0 %v327
    %356 = vmatprep.subr.bf16.mxu0 0
    %357 = vmatpush1.bf16.msra.mxu0 %v326
    %358 = vmatprep.subr.bf16.mxu0 0
    %359 = vmatpush2.bf16.msra.mxu0 0
    %360 = vmatprep.subr.bf16.mxu0 0
    %361 = vmatpush2.bf16.msra.mxu0 0
    %362 = vmatprep.subr.bf16.mxu0 0
    %363 = vmatpush2.bf16.msra.mxu0 0
    %364 = vmatprep.subr.bf16.mxu0 0
    %365 = vmatpush2.bf16.msra.mxu0 0
    %366 = vmatprep.subr.bf16.mxu0 0
    %367 = vmatpush2.bf16.msra.mxu0 0
    %368 = vmatprep.subr.bf16.mxu0 0
    %369 = vmatpush2.bf16.msra.mxu0 0
    %370 = vmatprep.subr.bf16.mxu0 0
    %371 = vmatpush2.bf16.msra.mxu0 0
    %372 = vmatprep.subr.bf16.mxu0 0
    %373 = vmatpush2.bf16.msra.mxu0 0
    %374 = vmatprep.mubr.bf16.mxu0 0
    %375 = vmatmul.mubr.bf16.gmra.mxu0 0
    %v376 = vpop.f32.mrf.mxu0
    %v377 = vadd.f32 0.0, %v376
    %v378 = vpop.f32.mrf.mxu0
    %v379 = vpop.f32.mrf.mxu0
    %v380 = vpop.f32.mrf.mxu0
    %381 = vdwg.mxu0
    %v382 = vadd.f32 %v293, %v377
    %v383 = vadd.f32 %v382, %v382
    %v384 = vsel %vm237, %v383, %v382
    %v385 = vxor.u32 %v384, 2147483648
    %v386 = vmul.f32 %v385, 1.442695
    %v387 = vpow.pop %v386
    %v388 = vadd.f32 %v387, 1.0
    %v389 = vrcp.pop %v388
    %v390 = vmul.f32 1.0, %v389
    %v391 = vadd.f32 %v390, %v390
    %v392 = vsub.f32 %v391, 1.0
    %v393 = vsel %vm237, %v392, %v390
    %394 = vrot.lane.b32.xlu0 %v393, 64
    %v395 = vpop.permute.xlu0 %394
    %396 = vrot.lane.b32.xlu0 %v393, 96
    %v397 = vpop.permute.xlu0 %396
    %398 = vrot.lane.b32.xlu0 %v393, 32
    %v399 = vpop.permute.xlu0 %398
    %v400 = vmul.f32 %v397, 0.0
    %v401 = vmul.f32 %v393, %v395
    %v402 = vadd.f32 %v400, %v401
    %v403 = vtanh.pop %v402
    %v404 = vmul.f32 %v399, %v403
    %v405 = vld [vmem:[#allocation2 + $0x8] sm:$0xff]
    %v406 = vpack.c.bf16 %v404, %v404
    %407 = vmatprep.subr.bf16.mxu0 0
    %408 = vmatpush1.bf16.msra.mxu0 %v333
    %409 = vmatprep.subr.bf16.mxu0 0
    %410 = vmatpush1.bf16.msra.mxu0 %v332
    %411 = vmatprep.subr.bf16.mxu0 0
    %412 = vmatpush1.bf16.msra.mxu0 %v331
    %413 = vmatprep.subr.bf16.mxu0 0
    %414 = vmatpush1.bf16.msra.mxu0 %v330
    %415 = vmatprep.subr.bf16.mxu0 0
    %416 = vmatpush1.bf16.msra.mxu0 %v329
    %417 = vmatprep.subr.bf16.mxu0 0
    %418 = vmatpush1.bf16.msra.mxu0 %v328
    %419 = vmatprep.subr.bf16.mxu0 0
    %420 = vmatpush1.bf16.msra.mxu0 %v327
    %421 = vmatprep.subr.bf16.mxu0 0
    %422 = vmatpush1.bf16.msra.mxu0 %v326
    %423 = vmatprep.subr.bf16.mxu0 0
    %424 = vmatpush2.bf16.msra.mxu0 0
    %425 = vmatprep.subr.bf16.mxu0 0
    %426 = vmatpush2.bf16.msra.mxu0 0
    %427 = vmatprep.subr.bf16.mxu0 0
    %428 = vmatpush2.bf16.msra.mxu0 0
    %429 = vmatprep.subr.bf16.mxu0 0
    %430 = vmatpush2.bf16.msra.mxu0 0
    %431 = vmatprep.subr.bf16.mxu0 0
    %432 = vmatpush2.bf16.msra.mxu0 0
    %433 = vmatprep.subr.bf16.mxu0 0
    %434 = vmatpush2.bf16.msra.mxu0 0
    %435 = vmatprep.subr.bf16.mxu0 0
    %436 = vmatpush2.bf16.msra.mxu0 0
    %437 = vmatprep.subr.bf16.mxu0 0
    %438 = vmatpush2.bf16.msra.mxu0 0
    %439 = vmatprep.mubr.bf16.mxu0 0
    %440 = vmatmul.mubr.bf16.gmra.mxu0 %v406
    %v441 = vpop.f32.mrf.mxu0
    %v442 = vadd.f32 0.0, %v441
    %v443 = vpop.f32.mrf.mxu0
    %v444 = vpop.f32.mrf.mxu0
    %v445 = vpop.f32.mrf.mxu0
    %446 = vdwg.mxu0
    %v447 = vadd.f32 %v405, %v442
    %v448 = vadd.f32 %v447, %v447
    %v449 = vsel %vm237, %v448, %v447
    %v450 = vxor.u32 %v449, 2147483648
    %v451 = vmul.f32 %v450, 1.442695
    %v452 = vpow.pop %v451
    %v453 = vadd.f32 %v452, 1.0
    %v454 = vrcp.pop %v453
    %v455 = vmul.f32 1.0, %v454
    %v456 = vadd.f32 %v455, %v455
    %v457 = vsub.f32 %v456, 1.0
    %v458 = vsel %vm237, %v457, %v455
    %459 = vrot.lane.b32.xlu0 %v458, 64
    %v460 = vpop.permute.xlu0 %459
    %461 = vrot.lane.b32.xlu0 %v458, 96
    %v462 = vpop.permute.xlu0 %461
    %463 = vrot.lane.b32.xlu0 %v458, 32
    %v464 = vpop.permute.xlu0 %463
    %v465 = vmul.f32 %v462, %v402
    %v466 = vmul.f32 %v458, %v460
    %v467 = vadd.f32 %v465, %v466
    %v468 = vtanh.pop %v467
    %v469 = vmul.f32 %v464, %v468
    %v470 = vpack.c.bf16 0.0, 0.0
    %v503 = vunpack.c.l.b16 %v254
    %v504 = vunpack.c.l.b16 %v255
    %v505 = vunpack.c.l.b16 %v256
    %v506 = vunpack.c.l.b16 %v257
    %v507 = vunpack.c.l.b16 %v258
    %v508 = vunpack.c.l.b16 %v259
    %v509 = vunpack.c.l.b16 %v260
    %v510 = vunpack.c.l.b16 %v261
    %v511 = vunpack.c.l.b16 %v262
    %v512 = vunpack.c.l.b16 %v263
    %v513 = vunpack.c.l.b16 %v264
    %v514 = vunpack.c.l.b16 %v265
    %v515 = vunpack.c.l.b16 %v266
    %v516 = vunpack.c.l.b16 %v267
    %v517 = vunpack.c.l.b16 %v268
    %v518 = vunpack.c.l.b16 %v269
    %v519 = vunpack.c.l.b16 %v270
    %v520 = vunpack.c.l.b16 %v271
    %v521 = vunpack.c.l.b16 %v272
    %v522 = vunpack.c.l.b16 %v273
    %v523 = vunpack.c.l.b16 %v274
    %v524 = vunpack.c.l.b16 %v275
    %v525 = vunpack.c.l.b16 %v276
    %v526 = vunpack.c.l.b16 %v277
    %v527 = vunpack.c.l.b16 %v278
    %v528 = vunpack.c.l.b16 %v279
    %v529 = vunpack.c.l.b16 %v280
    %v530 = vunpack.c.l.b16 %v281
    %v531 = vunpack.c.l.b16 %v282
    %v532 = vunpack.c.l.b16 %v283
    %v533 = vunpack.c.l.b16 %v284
    %v534 = vunpack.c.l.b16 %v285
    %v535 = vpack.c.b16 %v504, %v503
    %v536 = vpack.c.b16 %v506, %v505
    %v537 = vpack.c.b16 %v508, %v507
    %v538 = vpack.c.b16 %v510, %v509
    %v539 = vpack.c.b16 %v512, %v511
    %v540 = vpack.c.b16 %v514, %v513
    %v541 = vpack.c.b16 %v516, %v515
    %v542 = vpack.c.b16 %v518, %v517
    %v543 = vpack.c.b16 %v520, %v519
    %v544 = vpack.c.b16 %v522, %v521
    %v545 = vpack.c.b16 %v524, %v523
    %v546 = vpack.c.b16 %v526, %v525
    %v547 = vpack.c.b16 %v528, %v527
    %v548 = vpack.c.b16 %v530, %v529
    %v549 = vpack.c.b16 %v532, %v531
    %v550 = vpack.c.b16 %v534, %v533
    %567 = vmatprep.subr.bf16.mxu0 0
    %568 = vmatpush1.bf16.msra.mxu0 %v542
    %569 = vmatprep.subr.bf16.mxu0 0
    %570 = vmatpush1.bf16.msra.mxu0 %v541
    %571 = vmatprep.subr.bf16.mxu0 0
    %572 = vmatpush1.bf16.msra.mxu0 %v540
    %573 = vmatprep.subr.bf16.mxu0 0
    %574 = vmatpush1.bf16.msra.mxu0 %v539
    %575 = vmatprep.subr.bf16.mxu0 0
    %576 = vmatpush1.bf16.msra.mxu0 %v538
    %577 = vmatprep.subr.bf16.mxu0 0
    %578 = vmatpush1.bf16.msra.mxu0 %v537
    %579 = vmatprep.subr.bf16.mxu0 0
    %580 = vmatpush1.bf16.msra.mxu0 %v536
    %581 = vmatprep.subr.bf16.mxu0 0
    %582 = vmatpush1.bf16.msra.mxu0 %v535
    %583 = vmatprep.subr.bf16.mxu0 0
    %584 = vmatpush2.bf16.msra.mxu0 %v550
    %585 = vmatprep.subr.bf16.mxu0 0
    %586 = vmatpush2.bf16.msra.mxu0 %v549
    %587 = vmatprep.subr.bf16.mxu0 0
    %588 = vmatpush2.bf16.msra.mxu0 %v548
    %589 = vmatprep.subr.bf16.mxu0 0
    %590 = vmatpush2.bf16.msra.mxu0 %v547
    %591 = vmatprep.subr.bf16.mxu0 0
    %592 = vmatpush2.bf16.msra.mxu0 %v546
    %593 = vmatprep.subr.bf16.mxu0 0
    %594 = vmatpush2.bf16.msra.mxu0 %v545
    %595 = vmatprep.subr.bf16.mxu0 0
    %596 = vmatpush2.bf16.msra.mxu0 %v544
    %597 = vmatprep.subr.bf16.mxu0 0
    %598 = vmatpush2.bf16.msra.mxu0 %v543
    %599 = vmatprep.mubr.bf16.mxu0 %v470
    %600 = vmatmul.mubr.bf16.gmra.mxu0 %v406
    %v601 = vpop.f32.mrf.mxu0
    %v602 = vadd.f32 %v291, %v601
    %v603 = vpop.f32.mrf.mxu0
    %v604 = vpop.f32.mrf.mxu0
    %v605 = vpop.f32.mrf.mxu0
    %606 = vdwg.mxu0
    %v607 = vadd.f32 %v602, %v602
    %v608 = vsel %vm237, %v607, %v602
    %v609 = vxor.u32 %v608, 2147483648
    %v610 = vmul.f32 %v609, 1.442695
    %v611 = vpow.pop %v610
    %v612 = vadd.f32 %v611, 1.0
    %v613 = vrcp.pop %v612
    %v614 = vmul.f32 1.0, %v613
    %v615 = vadd.f32 %v614, %v614
    %v616 = vsub.f32 %v615, 1.0
    %v617 = vsel %vm237, %v616, %v614
    %618 = vrot.lane.b32.xlu0 %v617, 64
    %v619 = vpop.permute.xlu0 %618
    %620 = vrot.lane.b32.xlu0 %v617, 96
    %v621 = vpop.permute.xlu0 %620
    %622 = vrot.lane.b32.xlu0 %v617, 32
    %v623 = vpop.permute.xlu0 %622
    %v624 = vmul.f32 %v621, 0.0
    %v625 = vmul.f32 %v617, %v619
    %v626 = vadd.f32 %v624, %v625
    %v627 = vtanh.pop %v626
    %v628 = vmul.f32 %v623, %v627
    %629 = vst.msk [vmem:[#allocation3] sm:$0xff] %vm149, %v628
    %v630 = vld [vmem:[#allocation2 + $0x10] sm:$0xff]
    %v631 = vpack.c.bf16 %v469, %v469
    %632 = vmatprep.subr.bf16.mxu0 0
    %633 = vmatpush1.bf16.msra.mxu0 %v333
    %634 = vmatprep.subr.bf16.mxu0 0
    %635 = vmatpush1.bf16.msra.mxu0 %v332
    %636 = vmatprep.subr.bf16.mxu0 0
    %637 = vmatpush1.bf16.msra.mxu0 %v331
    %638 = vmatprep.subr.bf16.mxu0 0
    %639 = vmatpush1.bf16.msra.mxu0 %v330
    %640 = vmatprep.subr.bf16.mxu0 0
    %641 = vmatpush1.bf16.msra.mxu0 %v329
    %642 = vmatprep.subr.bf16.mxu0 0
    %643 = vmatpush1.bf16.msra.mxu0 %v328
    %644 = vmatprep.subr.bf16.mxu0 0
    %645 = vmatpush1.bf16.msra.mxu0 %v327
    %646 = vmatprep.subr.bf16.mxu0 0
    %647 = vmatpush1.bf16.msra.mxu0 %v326
    %648 = vmatprep.subr.bf16.mxu0 0
    %649 = vmatpush2.bf16.msra.mxu0 0
    %650 = vmatprep.subr.bf16.mxu0 0
    %651 = vmatpush2.bf16.msra.mxu0 0
    %652 = vmatprep.subr.bf16.mxu0 0
    %653 = vmatpush2.bf16.msra.mxu0 0
    %654 = vmatprep.subr.bf16.mxu0 0
    %655 = vmatpush2.bf16.msra.mxu0 0
    %656 = vmatprep.subr.bf16.mxu0 0
    %657 = vmatpush2.bf16.msra.mxu0 0
    %658 = vmatprep.subr.bf16.mxu0 0
    %659 = vmatpush2.bf16.msra.mxu0 0
    %660 = vmatprep.subr.bf16.mxu0 0
    %661 = vmatpush2.bf16.msra.mxu0 0
    %662 = vmatprep.subr.bf16.mxu0 0
    %663 = vmatpush2.bf16.msra.mxu0 0
    %664 = vmatprep.mubr.bf16.mxu0 0
    %665 = vmatmul.mubr.bf16.gmra.mxu0 %v631
    %v666 = vpop.f32.mrf.mxu0
    %v667 = vadd.f32 0.0, %v666
    %v668 = vpop.f32.mrf.mxu0
    %v669 = vpop.f32.mrf.mxu0
    %v670 = vpop.f32.mrf.mxu0
    %671 = vdwg.mxu0
    %v672 = vadd.f32 %v630, %v667
    %v673 = vadd.f32 %v672, %v672
    %v674 = vsel %vm237, %v673, %v672
    %v675 = vxor.u32 %v674, 2147483648
    %v676 = vmul.f32 %v675, 1.442695
    %v677 = vpow.pop %v676
    %v678 = vadd.f32 %v677, 1.0
    %v679 = vrcp.pop %v678
    %v680 = vmul.f32 1.0, %v679
    %v681 = vadd.f32 %v680, %v680
    %v682 = vsub.f32 %v681, 1.0
    %v683 = vsel %vm237, %v682, %v680
    %684 = vrot.lane.b32.xlu0 %v683, 64
    %v685 = vpop.permute.xlu0 %684
    %686 = vrot.lane.b32.xlu0 %v683, 96
    %v687 = vpop.permute.xlu0 %686
    %688 = vrot.lane.b32.xlu0 %v683, 32
    %v689 = vpop.permute.xlu0 %688
    %v690 = vmul.f32 %v687, %v467
    %v691 = vmul.f32 %v683, %v685
    %v692 = vadd.f32 %v690, %v691
    %v693 = vtanh.pop %v692
    %v694 = vmul.f32 %v689, %v693
    %v695 = vpack.c.bf16 %v628, %v628
    %696 = vmatprep.subr.bf16.mxu0 0
    %697 = vmatpush1.bf16.msra.mxu0 %v542
    %698 = vmatprep.subr.bf16.mxu0 0
    %699 = vmatpush1.bf16.msra.mxu0 %v541
    %700 = vmatprep.subr.bf16.mxu0 0
    %701 = vmatpush1.bf16.msra.mxu0 %v540
    %702 = vmatprep.subr.bf16.mxu0 0
    %703 = vmatpush1.bf16.msra.mxu0 %v539
    %704 = vmatprep.subr.bf16.mxu0 0
    %705 = vmatpush1.bf16.msra.mxu0 %v538
    %706 = vmatprep.subr.bf16.mxu0 0
    %707 = vmatpush1.bf16.msra.mxu0 %v537
    %708 = vmatprep.subr.bf16.mxu0 0
    %709 = vmatpush1.bf16.msra.mxu0 %v536
    %710 = vmatprep.subr.bf16.mxu0 0
    %711 = vmatpush1.bf16.msra.mxu0 %v535
    %712 = vmatprep.subr.bf16.mxu0 0
    %713 = vmatpush2.bf16.msra.mxu0 %v550
    %714 = vmatprep.subr.bf16.mxu0 0
    %715 = vmatpush2.bf16.msra.mxu0 %v549
    %716 = vmatprep.subr.bf16.mxu0 0
    %717 = vmatpush2.bf16.msra.mxu0 %v548
    %718 = vmatprep.subr.bf16.mxu0 0
    %719 = vmatpush2.bf16.msra.mxu0 %v547
    %720 = vmatprep.subr.bf16.mxu0 0
    %721 = vmatpush2.bf16.msra.mxu0 %v546
    %722 = vmatprep.subr.bf16.mxu0 0
    %723 = vmatpush2.bf16.msra.mxu0 %v545
    %724 = vmatprep.subr.bf16.mxu0 0
    %725 = vmatpush2.bf16.msra.mxu0 %v544
    %726 = vmatprep.subr.bf16.mxu0 0
    %727 = vmatpush2.bf16.msra.mxu0 %v543
    %728 = vmatprep.mubr.bf16.mxu0 %v695
    %729 = vmatmul.mubr.bf16.gmra.mxu0 %v631
    %v730 = vpop.f32.mrf.mxu0
    %v731 = vadd.f32 %v291, %v730
    %v732 = vpop.f32.mrf.mxu0
    %v733 = vpop.f32.mrf.mxu0
    %v734 = vpop.f32.mrf.mxu0
    %735 = vdwg.mxu0
    %v736 = vadd.f32 %v731, %v731
    %v737 = vsel %vm237, %v736, %v731
    %v738 = vxor.u32 %v737, 2147483648
    %v739 = vmul.f32 %v738, 1.442695
    %v740 = vpow.pop %v739
    %v741 = vadd.f32 %v740, 1.0
    %v742 = vrcp.pop %v741
    %v743 = vmul.f32 1.0, %v742
    %v744 = vadd.f32 %v743, %v743
    %v745 = vsub.f32 %v744, 1.0
    %v746 = vsel %vm237, %v745, %v743
    %747 = vrot.lane.b32.xlu0 %v746, 64
    %v748 = vpop.permute.xlu0 %747
    %749 = vrot.lane.b32.xlu0 %v746, 96
    %v750 = vpop.permute.xlu0 %749
    %751 = vrot.lane.b32.xlu0 %v746, 32
    %v752 = vpop.permute.xlu0 %751
    %v753 = vmul.f32 %v750, %v626
    %v754 = vmul.f32 %v746, %v748
    %v755 = vadd.f32 %v753, %v754
    %v756 = vtanh.pop %v755
    %v757 = vmul.f32 %v752, %v756
    %759 = vrot.lane.b32.xlu0 %v757, 32
    %v760 = vpop.permute.xlu0 %759
    %vm762 = vcmask 523520
    %763 = vst.msk [vmem:[#allocation3] sm:$0xff] %vm762, %v760
    %v764 = vld [vmem:[#allocation2 + $0x18] sm:$0xff]
    %v765 = vpack.c.bf16 %v694, %v694
    %766 = vmatprep.subr.bf16.mxu0 0
    %767 = vmatpush1.bf16.msra.mxu0 %v333
    %768 = vmatprep.subr.bf16.mxu0 0
    %769 = vmatpush1.bf16.msra.mxu0 %v332
    %770 = vmatprep.subr.bf16.mxu0 0
    %771 = vmatpush1.bf16.msra.mxu0 %v331
    %772 = vmatprep.subr.bf16.mxu0 0
    %773 = vmatpush1.bf16.msra.mxu0 %v330
    %774 = vmatprep.subr.bf16.mxu0 0
    %775 = vmatpush1.bf16.msra.mxu0 %v329
    %776 = vmatprep.subr.bf16.mxu0 0
    %777 = vmatpush1.bf16.msra.mxu0 %v328
    %778 = vmatprep.subr.bf16.mxu0 0
    %779 = vmatpush1.bf16.msra.mxu0 %v327
    %780 = vmatprep.subr.bf16.mxu0 0
    %781 = vmatpush1.bf16.msra.mxu0 %v326
    %782 = vmatprep.subr.bf16.mxu0 0
    %783 = vmatpush2.bf16.msra.mxu0 0
    %784 = vmatprep.subr.bf16.mxu0 0
    %785 = vmatpush2.bf16.msra.mxu0 0
    %786 = vmatprep.subr.bf16.mxu0 0
    %787 = vmatpush2.bf16.msra.mxu0 0
    %788 = vmatprep.subr.bf16.mxu0 0
    %789 = vmatpush2.bf16.msra.mxu0 0
    %790 = vmatprep.subr.bf16.mxu0 0
    %791 = vmatpush2.bf16.msra.mxu0 0
    %792 = vmatprep.subr.bf16.mxu0 0
    %793 = vmatpush2.bf16.msra.mxu0 0
    %794 = vmatprep.subr.bf16.mxu0 0
    %795 = vmatpush2.bf16.msra.mxu0 0
    %796 = vmatprep.subr.bf16.mxu0 0
    %797 = vmatpush2.bf16.msra.mxu0 0
    %798 = vmatprep.mubr.bf16.mxu0 0
    %799 = vmatmul.mubr.bf16.gmra.mxu0 %v765
    %v800 = vpop.f32.mrf.mxu0
    %v801 = vadd.f32 0.0, %v800
    %v802 = vpop.f32.mrf.mxu0
    %v803 = vpop.f32.mrf.mxu0
    %v804 = vpop.f32.mrf.mxu0
    %805 = vdwg.mxu0
    %v806 = vadd.f32 %v764, %v801
    %v807 = vadd.f32 %v806, %v806
    %v808 = vsel %vm237, %v807, %v806
    %v809 = vxor.u32 %v808, 2147483648
    %v810 = vmul.f32 %v809, 1.442695
    %v811 = vpow.pop %v810
    %v812 = vadd.f32 %v811, 1.0
    %v813 = vrcp.pop %v812
    %v814 = vmul.f32 1.0, %v813
    %v815 = vadd.f32 %v814, %v814
    %v816 = vsub.f32 %v815, 1.0
    %v817 = vsel %vm237, %v816, %v814
    %818 = vrot.lane.b32.xlu0 %v817, 64
    %v819 = vpop.permute.xlu0 %818
    %820 = vrot.lane.b32.xlu0 %v817, 96
    %v821 = vpop.permute.xlu0 %820
    %822 = vrot.lane.b32.xlu0 %v817, 32
    %v823 = vpop.permute.xlu0 %822
    %v824 = vmul.f32 %v821, %v692
    %v825 = vmul.f32 %v817, %v819
    %v826 = vadd.f32 %v824, %v825
    %v827 = vtanh.pop %v826
    %v828 = vmul.f32 %v823, %v827
    %v829 = vpack.c.bf16 %v757, %v757
    %830 = vmatprep.subr.bf16.mxu0 0
    %831 = vmatpush1.bf16.msra.mxu0 %v542
    %832 = vmatprep.subr.bf16.mxu0 0
    %833 = vmatpush1.bf16.msra.mxu0 %v541
    %834 = vmatprep.subr.bf16.mxu0 0
    %835 = vmatpush1.bf16.msra.mxu0 %v540
    %836 = vmatprep.subr.bf16.mxu0 0
    %837 = vmatpush1.bf16.msra.mxu0 %v539
    %838 = vmatprep.subr.bf16.mxu0 0
    %839 = vmatpush1.bf16.msra.mxu0 %v538
    %840 = vmatprep.subr.bf16.mxu0 0
    %841 = vmatpush1.bf16.msra.mxu0 %v537
    %842 = vmatprep.subr.bf16.mxu0 0
    %843 = vmatpush1.bf16.msra.mxu0 %v536
    %844 = vmatprep.subr.bf16.mxu0 0
    %845 = vmatpush1.bf16.msra.mxu0 %v535
    %846 = vmatprep.subr.bf16.mxu0 0
    %847 = vmatpush2.bf16.msra.mxu0 %v550
    %848 = vmatprep.subr.bf16.mxu0 0
    %849 = vmatpush2.bf16.msra.mxu0 %v549
    %850 = vmatprep.subr.bf16.mxu0 0
    %851 = vmatpush2.bf16.msra.mxu0 %v548
    %852 = vmatprep.subr.bf16.mxu0 0
    %853 = vmatpush2.bf16.msra.mxu0 %v547
    %854 = vmatprep.subr.bf16.mxu0 0
    %855 = vmatpush2.bf16.msra.mxu0 %v546
    %856 = vmatprep.subr.bf16.mxu0 0
    %857 = vmatpush2.bf16.msra.mxu0 %v545
    %858 = vmatprep.subr.bf16.mxu0 0
    %859 = vmatpush2.bf16.msra.mxu0 %v544
    %860 = vmatprep.subr.bf16.mxu0 0
    %861 = vmatpush2.bf16.msra.mxu0 %v543
    %862 = vmatprep.mubr.bf16.mxu0 %v829
    %863 = vmatmul.mubr.bf16.gmra.mxu0 %v765
    %v864 = vpop.f32.mrf.mxu0
    %v865 = vadd.f32 %v291, %v864
    %v866 = vpop.f32.mrf.mxu0
    %v867 = vpop.f32.mrf.mxu0
    %v868 = vpop.f32.mrf.mxu0
    %869 = vdwg.mxu0
    %v870 = vadd.f32 %v865, %v865
    %v871 = vsel %vm237, %v870, %v865
    %v872 = vxor.u32 %v871, 2147483648
    %v873 = vmul.f32 %v872, 1.442695
    %v874 = vpow.pop %v873
    %v875 = vadd.f32 %v874, 1.0
    %v876 = vrcp.pop %v875
    %v877 = vmul.f32 1.0, %v876
    %v878 = vadd.f32 %v877, %v877
    %v879 = vsub.f32 %v878, 1.0
    %v880 = vsel %vm237, %v879, %v877
    %881 = vrot.lane.b32.xlu0 %v880, 64
    %v882 = vpop.permute.xlu0 %881
    %883 = vrot.lane.b32.xlu0 %v880, 96
    %v884 = vpop.permute.xlu0 %883
    %885 = vrot.lane.b32.xlu0 %v880, 32
    %v886 = vpop.permute.xlu0 %885
    %v887 = vmul.f32 %v884, %v755
    %v888 = vmul.f32 %v880, %v882
    %v889 = vadd.f32 %v887, %v888
    %v890 = vtanh.pop %v889
    %v891 = vmul.f32 %v886, %v890
    %893 = vrot.lane.b32.xlu0 %v891, 64
    %v894 = vpop.permute.xlu0 %893
    %vm896 = vcmask 785920
    %897 = vst.msk [vmem:[#allocation3] sm:$0xff] %vm896, %v894
    %v898 = vld [vmem:[#allocation2 + $0x20] sm:$0xff]
    %v899 = vpack.c.bf16 %v828, %v828
    %900 = vmatprep.subr.bf16.mxu0 0
    %901 = vmatpush1.bf16.msra.mxu0 %v333
    %902 = vmatprep.subr.bf16.mxu0 0
    %903 = vmatpush1.bf16.msra.mxu0 %v332
    %904 = vmatprep.subr.bf16.mxu0 0
    %905 = vmatpush1.bf16.msra.mxu0 %v331
    %906 = vmatprep.subr.bf16.mxu0 0
    %907 = vmatpush1.bf16.msra.mxu0 %v330
    %908 = vmatprep.subr.bf16.mxu0 0
    %909 = vmatpush1.bf16.msra.mxu0 %v329
    %910 = vmatprep.subr.bf16.mxu0 0
    %911 = vmatpush1.bf16.msra.mxu0 %v328
    %912 = vmatprep.subr.bf16.mxu0 0
    %913 = vmatpush1.bf16.msra.mxu0 %v327
    %914 = vmatprep.subr.bf16.mxu0 0
    %915 = vmatpush1.bf16.msra.mxu0 %v326
    %916 = vmatprep.subr.bf16.mxu0 0
    %917 = vmatpush2.bf16.msra.mxu0 0
    %918 = vmatprep.subr.bf16.mxu0 0
    %919 = vmatpush2.bf16.msra.mxu0 0
    %920 = vmatprep.subr.bf16.mxu0 0
    %921 = vmatpush2.bf16.msra.mxu0 0
    %922 = vmatprep.subr.bf16.mxu0 0
    %923 = vmatpush2.bf16.msra.mxu0 0
    %924 = vmatprep.subr.bf16.mxu0 0
    %925 = vmatpush2.bf16.msra.mxu0 0
    %926 = vmatprep.subr.bf16.mxu0 0
    %927 = vmatpush2.bf16.msra.mxu0 0
    %928 = vmatprep.subr.bf16.mxu0 0
    %929 = vmatpush2.bf16.msra.mxu0 0
    %930 = vmatprep.subr.bf16.mxu0 0
    %931 = vmatpush2.bf16.msra.mxu0 0
    %932 = vmatprep.mubr.bf16.mxu0 0
    %933 = vmatmul.mubr.bf16.gmra.mxu0 %v899
    %v934 = vpop.f32.mrf.mxu0
    %v935 = vadd.f32 0.0, %v934
    %v936 = vpop.f32.mrf.mxu0
    %v937 = vpop.f32.mrf.mxu0
    %v938 = vpop.f32.mrf.mxu0
    %939 = vdwg.mxu0
    %v940 = vadd.f32 %v898, %v935
    %v941 = vadd.f32 %v940, %v940
    %v942 = vsel %vm237, %v941, %v940
    %v943 = vxor.u32 %v942, 2147483648
    %v944 = vmul.f32 %v943, 1.442695
    %v945 = vpow.pop %v944
    %v946 = vadd.f32 %v945, 1.0
    %v947 = vrcp.pop %v946
    %v948 = vmul.f32 1.0, %v947
    %v949 = vadd.f32 %v948, %v948
    %v950 = vsub.f32 %v949, 1.0
    %v951 = vsel %vm237, %v950, %v948
    %952 = vrot.lane.b32.xlu0 %v951, 64
    %v953 = vpop.permute.xlu0 %952
    %954 = vrot.lane.b32.xlu0 %v951, 96
    %v955 = vpop.permute.xlu0 %954
    %956 = vrot.lane.b32.xlu0 %v951, 32
    %v957 = vpop.permute.xlu0 %956
    %v958 = vmul.f32 %v955, %v826
    %v959 = vmul.f32 %v951, %v953
    %v960 = vadd.f32 %v958, %v959
    %v961 = vtanh.pop %v960
    %v962 = vmul.f32 %v957, %v961
    %v963 = vpack.c.bf16 %v891, %v891
    %964 = vmatprep.subr.bf16.mxu0 0
    %965 = vmatpush1.bf16.msra.mxu0 %v542
    %966 = vmatprep.subr.bf16.mxu0 0
    %967 = vmatpush1.bf16.msra.mxu0 %v541
    %968 = vmatprep.subr.bf16.mxu0 0
    %969 = vmatpush1.bf16.msra.mxu0 %v540
    %970 = vmatprep.subr.bf16.mxu0 0
    %971 = vmatpush1.bf16.msra.mxu0 %v539
    %972 = vmatprep.subr.bf16.mxu0 0
    %973 = vmatpush1.bf16.msra.mxu0 %v538
    %974 = vmatprep.subr.bf16.mxu0 0
    %975 = vmatpush1.bf16.msra.mxu0 %v537
    %976 = vmatprep.subr.bf16.mxu0 0
    %977 = vmatpush1.bf16.msra.mxu0 %v536
    %978 = vmatprep.subr.bf16.mxu0 0
    %979 = vmatpush1.bf16.msra.mxu0 %v535
    %980 = vmatprep.subr.bf16.mxu0 0
    %981 = vmatpush2.bf16.msra.mxu0 %v550
    %982 = vmatprep.subr.bf16.mxu0 0
    %983 = vmatpush2.bf16.msra.mxu0 %v549
    %984 = vmatprep.subr.bf16.mxu0 0
    %985 = vmatpush2.bf16.msra.mxu0 %v548
    %986 = vmatprep.subr.bf16.mxu0 0
    %987 = vmatpush2.bf16.msra.mxu0 %v547
    %988 = vmatprep.subr.bf16.mxu0 0
    %989 = vmatpush2.bf16.msra.mxu0 %v546
    %990 = vmatprep.subr.bf16.mxu0 0
    %991 = vmatpush2.bf16.msra.mxu0 %v545
    %992 = vmatprep.subr.bf16.mxu0 0
    %993 = vmatpush2.bf16.msra.mxu0 %v544
    %994 = vmatprep.subr.bf16.mxu0 0
    %995 = vmatpush2.bf16.msra.mxu0 %v543
    %996 = vmatprep.mubr.bf16.mxu0 %v963
    %997 = vmatmul.mubr.bf16.gmra.mxu0 %v899
    %v998 = vpop.f32.mrf.mxu0
    %v999 = vadd.f32 %v291, %v998
    %v1000 = vpop.f32.mrf.mxu0
    %v1001 = vpop.f32.mrf.mxu0
    %v1002 = vpop.f32.mrf.mxu0
    %1003 = vdwg.mxu0
    %v1004 = vadd.f32 %v999, %v999
    %v1005 = vsel %vm237, %v1004, %v999
    %v1006 = vxor.u32 %v1005, 2147483648
    %v1007 = vmul.f32 %v1006, 1.442695
    %v1008 = vpow.pop %v1007
    %v1009 = vadd.f32 %v1008, 1.0
    %v1010 = vrcp.pop %v1009
    %v1011 = vmul.f32 1.0, %v1010
    %v1012 = vadd.f32 %v1011, %v1011
    %v1013 = vsub.f32 %v1012, 1.0
    %v1014 = vsel %vm237, %v1013, %v1011
    %1015 = vrot.lane.b32.xlu0 %v1014, 64
    %v1016 = vpop.permute.xlu0 %1015
    %1017 = vrot.lane.b32.xlu0 %v1014, 96
    %v1018 = vpop.permute.xlu0 %1017
    %1019 = vrot.lane.b32.xlu0 %v1014, 32
    %v1020 = vpop.permute.xlu0 %1019
    %v1021 = vmul.f32 %v1018, %v889
    %v1022 = vmul.f32 %v1014, %v1016
    %v1023 = vadd.f32 %v1021, %v1022
    %v1024 = vtanh.pop %v1023
    %v1025 = vmul.f32 %v1020, %v1024
    %1027 = vrot.lane.b32.xlu0 %v1025, 96
    %v1028 = vpop.permute.xlu0 %1027
    %vm1030 = vcmask 1048320
    %1031 = vst.msk [vmem:[#allocation3] sm:$0xff] %vm1030, %v1028
    %v1032 = vld [vmem:[#allocation2 + $0x28] sm:$0xff]
    %v1033 = vpack.c.bf16 %v962, %v962
    %1034 = vmatprep.subr.bf16.mxu0 0
    %1035 = vmatpush1.bf16.msra.mxu0 %v333
    %1036 = vmatprep.subr.bf16.mxu0 0
    %1037 = vmatpush1.bf16.msra.mxu0 %v332
    %1038 = vmatprep.subr.bf16.mxu0 0
    %1039 = vmatpush1.bf16.msra.mxu0 %v331
    %1040 = vmatprep.subr.bf16.mxu0 0
    %1041 = vmatpush1.bf16.msra.mxu0 %v330
    %1042 = vmatprep.subr.bf16.mxu0 0
    %1043 = vmatpush1.bf16.msra.mxu0 %v329
    %1044 = vmatprep.subr.bf16.mxu0 0
    %1045 = vmatpush1.bf16.msra.mxu0 %v328
    %1046 = vmatprep.subr.bf16.mxu0 0
    %1047 = vmatpush1.bf16.msra.mxu0 %v327
    %1048 = vmatprep.subr.bf16.mxu0 0
    %1049 = vmatpush1.bf16.msra.mxu0 %v326
    %1050 = vmatprep.subr.bf16.mxu0 0
    %1051 = vmatpush2.bf16.msra.mxu0 0
    %1052 = vmatprep.subr.bf16.mxu0 0
    %1053 = vmatpush2.bf16.msra.mxu0 0
    %1054 = vmatprep.subr.bf16.mxu0 0
    %1055 = vmatpush2.bf16.msra.mxu0 0
    %1056 = vmatprep.subr.bf16.mxu0 0
    %1057 = vmatpush2.bf16.msra.mxu0 0
    %1058 = vmatprep.subr.bf16.mxu0 0
    %1059 = vmatpush2.bf16.msra.mxu0 0
    %1060 = vmatprep.subr.bf16.mxu0 0
    %1061 = vmatpush2.bf16.msra.mxu0 0
    %1062 = vmatprep.subr.bf16.mxu0 0
    %1063 = vmatpush2.bf16.msra.mxu0 0
    %1064 = vmatprep.subr.bf16.mxu0 0
    %1065 = vmatpush2.bf16.msra.mxu0 0
    %1066 = vmatprep.mubr.bf16.mxu0 0
    %1067 = vmatmul.mubr.bf16.gmra.mxu0 %v1033
    %v1068 = vpop.f32.mrf.mxu0
    %v1069 = vadd.f32 0.0, %v1068
    %v1070 = vpop.f32.mrf.mxu0
    %v1071 = vpop.f32.mrf.mxu0
    %v1072 = vpop.f32.mrf.mxu0
    %1073 = vdwg.mxu0
    %v1074 = vadd.f32 %v1032, %v1069
    %v1075 = vadd.f32 %v1074, %v1074
    %v1076 = vsel %vm237, %v1075, %v1074
    %v1077 = vxor.u32 %v1076, 2147483648
    %v1078 = vmul.f32 %v1077, 1.442695
    %v1079 = vpow.pop %v1078
    %v1080 = vadd.f32 %v1079, 1.0
    %v1081 = vrcp.pop %v1080
    %v1082 = vmul.f32 1.0, %v1081
    %v1083 = vadd.f32 %v1082, %v1082
    %v1084 = vsub.f32 %v1083, 1.0
    %v1085 = vsel %vm237, %v1084, %v1082
    %1086 = vrot.lane.b32.xlu0 %v1085, 64
    %v1087 = vpop.permute.xlu0 %1086
    %1088 = vrot.lane.b32.xlu0 %v1085, 96
    %v1089 = vpop.permute.xlu0 %1088
    %1090 = vrot.lane.b32.xlu0 %v1085, 32
    %v1091 = vpop.permute.xlu0 %1090
    %v1092 = vmul.f32 %v1089, %v960
    %v1093 = vmul.f32 %v1085, %v1087
    %v1094 = vadd.f32 %v1092, %v1093
    %v1095 = vtanh.pop %v1094
    %v1096 = vmul.f32 %v1091, %v1095
    %v1097 = vpack.c.bf16 %v1025, %v1025
    %1098 = vmatprep.subr.bf16.mxu0 0
    %1099 = vmatpush1.bf16.msra.mxu0 %v542
    %1100 = vmatprep.subr.bf16.mxu0 0
    %1101 = vmatpush1.bf16.msra.mxu0 %v541
    %1102 = vmatprep.subr.bf16.mxu0 0
    %1103 = vmatpush1.bf16.msra.mxu0 %v540
    %1104 = vmatprep.subr.bf16.mxu0 0
    %1105 = vmatpush1.bf16.msra.mxu0 %v539
    %1106 = vmatprep.subr.bf16.mxu0 0
    %1107 = vmatpush1.bf16.msra.mxu0 %v538
    %1108 = vmatprep.subr.bf16.mxu0 0
    %1109 = vmatpush1.bf16.msra.mxu0 %v537
    %1110 = vmatprep.subr.bf16.mxu0 0
    %1111 = vmatpush1.bf16.msra.mxu0 %v536
    %1112 = vmatprep.subr.bf16.mxu0 0
    %1113 = vmatpush1.bf16.msra.mxu0 %v535
    %1114 = vmatprep.subr.bf16.mxu0 0
    %1115 = vmatpush2.bf16.msra.mxu0 %v550
    %1116 = vmatprep.subr.bf16.mxu0 0
    %1117 = vmatpush2.bf16.msra.mxu0 %v549
    %1118 = vmatprep.subr.bf16.mxu0 0
    %1119 = vmatpush2.bf16.msra.mxu0 %v548
    %1120 = vmatprep.subr.bf16.mxu0 0
    %1121 = vmatpush2.bf16.msra.mxu0 %v547
    %1122 = vmatprep.subr.bf16.mxu0 0
    %1123 = vmatpush2.bf16.msra.mxu0 %v546
    %1124 = vmatprep.subr.bf16.mxu0 0
    %1125 = vmatpush2.bf16.msra.mxu0 %v545
    %1126 = vmatprep.subr.bf16.mxu0 0
    %1127 = vmatpush2.bf16.msra.mxu0 %v544
    %1128 = vmatprep.subr.bf16.mxu0 0
    %1129 = vmatpush2.bf16.msra.mxu0 %v543
    %1130 = vmatprep.mubr.bf16.mxu0 %v1097
    %1131 = vmatmul.mubr.bf16.gmra.mxu0 %v1033
    %v1132 = vpop.f32.mrf.mxu0
    %v1133 = vadd.f32 %v291, %v1132
    %v1134 = vpop.f32.mrf.mxu0
    %v1135 = vpop.f32.mrf.mxu0
    %v1136 = vpop.f32.mrf.mxu0
    %1137 = vdwg.mxu0
    %v1138 = vadd.f32 %v1133, %v1133
    %v1139 = vsel %vm237, %v1138, %v1133
    %v1140 = vxor.u32 %v1139, 2147483648
    %v1141 = vmul.f32 %v1140, 1.442695
    %v1142 = vpow.pop %v1141
    %v1143 = vadd.f32 %v1142, 1.0
    %v1144 = vrcp.pop %v1143
    %v1145 = vmul.f32 1.0, %v1144
    %v1146 = vadd.f32 %v1145, %v1145
    %v1147 = vsub.f32 %v1146, 1.0
    %v1148 = vsel %vm237, %v1147, %v1145
    %1149 = vrot.lane.b32.xlu0 %v1148, 64
    %v1150 = vpop.permute.xlu0 %1149
    %1151 = vrot.lane.b32.xlu0 %v1148, 96
    %v1152 = vpop.permute.xlu0 %1151
    %1153 = vrot.lane.b32.xlu0 %v1148, 32
    %v1154 = vpop.permute.xlu0 %1153
    %v1155 = vmul.f32 %v1152, %v1023
    %v1156 = vmul.f32 %v1148, %v1150
    %v1157 = vadd.f32 %v1155, %v1156
    %v1158 = vtanh.pop %v1157
    %v1159 = vmul.f32 %v1154, %v1158
    %1160 = vst.msk [vmem:[#allocation3 + $0x8] sm:$0xff] %vm149, %v1159
    %v1161 = vld [vmem:[#allocation2 + $0x30] sm:$0xff]
    %v1162 = vpack.c.bf16 %v1096, %v1096
    %1163 = vmatprep.subr.bf16.mxu0 0
    %1164 = vmatpush1.bf16.msra.mxu0 %v333
    %1165 = vmatprep.subr.bf16.mxu0 0
    %1166 = vmatpush1.bf16.msra.mxu0 %v332
    %1167 = vmatprep.subr.bf16.mxu0 0
    %1168 = vmatpush1.bf16.msra.mxu0 %v331
    %1169 = vmatprep.subr.bf16.mxu0 0
    %1170 = vmatpush1.bf16.msra.mxu0 %v330
    %1171 = vmatprep.subr.bf16.mxu0 0
    %1172 = vmatpush1.bf16.msra.mxu0 %v329
    %1173 = vmatprep.subr.bf16.mxu0 0
    %1174 = vmatpush1.bf16.msra.mxu0 %v328
    %1175 = vmatprep.subr.bf16.mxu0 0
    %1176 = vmatpush1.bf16.msra.mxu0 %v327
    %1177 = vmatprep.subr.bf16.mxu0 0
    %1178 = vmatpush1.bf16.msra.mxu0 %v326
    %1179 = vmatprep.subr.bf16.mxu0 0
    %1180 = vmatpush2.bf16.msra.mxu0 0
    %1181 = vmatprep.subr.bf16.mxu0 0
    %1182 = vmatpush2.bf16.msra.mxu0 0
    %1183 = vmatprep.subr.bf16.mxu0 0
    %1184 = vmatpush2.bf16.msra.mxu0 0
    %1185 = vmatprep.subr.bf16.mxu0 0
    %1186 = vmatpush2.bf16.msra.mxu0 0
    %1187 = vmatprep.subr.bf16.mxu0 0
    %1188 = vmatpush2.bf16.msra.mxu0 0
    %1189 = vmatprep.subr.bf16.mxu0 0
    %1190 = vmatpush2.bf16.msra.mxu0 0
    %1191 = vmatprep.subr.bf16.mxu0 0
    %1192 = vmatpush2.bf16.msra.mxu0 0
    %1193 = vmatprep.subr.bf16.mxu0 0
    %1194 = vmatpush2.bf16.msra.mxu0 0
    %1195 = vmatprep.mubr.bf16.mxu0 0
    %1196 = vmatmul.mubr.bf16.gmra.mxu0 %v1162
    %v1197 = vpop.f32.mrf.mxu0
    %v1198 = vadd.f32 0.0, %v1197
    %v1199 = vpop.f32.mrf.mxu0
    %v1200 = vpop.f32.mrf.mxu0
    %v1201 = vpop.f32.mrf.mxu0
    %1202 = vdwg.mxu0
    %v1203 = vadd.f32 %v1161, %v1198
    %v1204 = vadd.f32 %v1203, %v1203
    %v1205 = vsel %vm237, %v1204, %v1203
    %v1206 = vxor.u32 %v1205, 2147483648
    %v1207 = vmul.f32 %v1206, 1.442695
    %v1208 = vpow.pop %v1207
    %v1209 = vadd.f32 %v1208, 1.0
    %v1210 = vrcp.pop %v1209
    %v1211 = vmul.f32 1.0, %v1210
    %v1212 = vadd.f32 %v1211, %v1211
    %v1213 = vsub.f32 %v1212, 1.0
    %v1214 = vsel %vm237, %v1213, %v1211
    %1215 = vrot.lane.b32.xlu0 %v1214, 64
    %v1216 = vpop.permute.xlu0 %1215
    %1217 = vrot.lane.b32.xlu0 %v1214, 96
    %v1218 = vpop.permute.xlu0 %1217
    %1219 = vrot.lane.b32.xlu0 %v1214, 32
    %v1220 = vpop.permute.xlu0 %1219
    %v1221 = vmul.f32 %v1218, %v1094
    %v1222 = vmul.f32 %v1214, %v1216
    %v1223 = vadd.f32 %v1221, %v1222
    %v1224 = vtanh.pop %v1223
    %v1225 = vmul.f32 %v1220, %v1224
    %v1226 = vpack.c.bf16 %v1159, %v1159
    %1227 = vmatprep.subr.bf16.mxu0 0
    %1228 = vmatpush1.bf16.msra.mxu0 %v542
    %1229 = vmatprep.subr.bf16.mxu0 0
    %1230 = vmatpush1.bf16.msra.mxu0 %v541
    %1231 = vmatprep.subr.bf16.mxu0 0
    %1232 = vmatpush1.bf16.msra.mxu0 %v540
    %1233 = vmatprep.subr.bf16.mxu0 0
    %1234 = vmatpush1.bf16.msra.mxu0 %v539
    %1235 = vmatprep.subr.bf16.mxu0 0
    %1236 = vmatpush1.bf16.msra.mxu0 %v538
    %1237 = vmatprep.subr.bf16.mxu0 0
    %1238 = vmatpush1.bf16.msra.mxu0 %v537
    %1239 = vmatprep.subr.bf16.mxu0 0
    %1240 = vmatpush1.bf16.msra.mxu0 %v536
    %1241 = vmatprep.subr.bf16.mxu0 0
    %1242 = vmatpush1.bf16.msra.mxu0 %v535
    %1243 = vmatprep.subr.bf16.mxu0 0
    %1244 = vmatpush2.bf16.msra.mxu0 %v550
    %1245 = vmatprep.subr.bf16.mxu0 0
    %1246 = vmatpush2.bf16.msra.mxu0 %v549
    %1247 = vmatprep.subr.bf16.mxu0 0
    %1248 = vmatpush2.bf16.msra.mxu0 %v548
    %1249 = vmatprep.subr.bf16.mxu0 0
    %1250 = vmatpush2.bf16.msra.mxu0 %v547
    %1251 = vmatprep.subr.bf16.mxu0 0
    %1252 = vmatpush2.bf16.msra.mxu0 %v546
    %1253 = vmatprep.subr.bf16.mxu0 0
    %1254 = vmatpush2.bf16.msra.mxu0 %v545
    %1255 = vmatprep.subr.bf16.mxu0 0
    %1256 = vmatpush2.bf16.msra.mxu0 %v544
    %1257 = vmatprep.subr.bf16.mxu0 0
    %1258 = vmatpush2.bf16.msra.mxu0 %v543
    %1259 = vmatprep.mubr.bf16.mxu0 %v1226
    %1260 = vmatmul.mubr.bf16.gmra.mxu0 %v1162
    %v1261 = vpop.f32.mrf.mxu0
    %v1262 = vadd.f32 %v291, %v1261
    %v1263 = vpop.f32.mrf.mxu0
    %v1264 = vpop.f32.mrf.mxu0
    %v1265 = vpop.f32.mrf.mxu0
    %1266 = vdwg.mxu0
    %v1267 = vadd.f32 %v1262, %v1262
    %v1268 = vsel %vm237, %v1267, %v1262
    %v1269 = vxor.u32 %v1268, 2147483648
    %v1270 = vmul.f32 %v1269, 1.442695
    %v1271 = vpow.pop %v1270
    %v1272 = vadd.f32 %v1271, 1.0
    %v1273 = vrcp.pop %v1272
    %v1274 = vmul.f32 1.0, %v1273
    %v1275 = vadd.f32 %v1274, %v1274
    %v1276 = vsub.f32 %v1275, 1.0
    %v1277 = vsel %vm237, %v1276, %v1274
    %1278 = vrot.lane.b32.xlu0 %v1277, 64
    %v1279 = vpop.permute.xlu0 %1278
    %1280 = vrot.lane.b32.xlu0 %v1277, 96
    %v1281 = vpop.permute.xlu0 %1280
    %1282 = vrot.lane.b32.xlu0 %v1277, 32
    %v1283 = vpop.permute.xlu0 %1282
    %v1284 = vmul.f32 %v1281, %v1157
    %v1285 = vmul.f32 %v1277, %v1279
    %v1286 = vadd.f32 %v1284, %v1285
    %v1287 = vtanh.pop %v1286
    %v1288 = vmul.f32 %v1283, %v1287
    %1290 = vrot.lane.b32.xlu0 %v1288, 32
    %v1291 = vpop.permute.xlu0 %1290
    %1293 = vst.msk [vmem:[#allocation3 + $0x8] sm:$0xff] %vm762, %v1291
    %v1294 = vld [vmem:[#allocation2 + $0x38] sm:$0xff]
    %v1295 = vpack.c.bf16 %v1225, %v1225
    %1296 = vmatprep.subr.bf16.mxu0 0
    %1297 = vmatpush1.bf16.msra.mxu0 %v333
    %1298 = vmatprep.subr.bf16.mxu0 0
    %1299 = vmatpush1.bf16.msra.mxu0 %v332
    %1300 = vmatprep.subr.bf16.mxu0 0
    %1301 = vmatpush1.bf16.msra.mxu0 %v331
    %1302 = vmatprep.subr.bf16.mxu0 0
    %1303 = vmatpush1.bf16.msra.mxu0 %v330
    %1304 = vmatprep.subr.bf16.mxu0 0
    %1305 = vmatpush1.bf16.msra.mxu0 %v329
    %1306 = vmatprep.subr.bf16.mxu0 0
    %1307 = vmatpush1.bf16.msra.mxu0 %v328
    %1308 = vmatprep.subr.bf16.mxu0 0
    %1309 = vmatpush1.bf16.msra.mxu0 %v327
    %1310 = vmatprep.subr.bf16.mxu0 0
    %1311 = vmatpush1.bf16.msra.mxu0 %v326
    %1312 = vmatprep.subr.bf16.mxu0 0
    %1313 = vmatpush2.bf16.msra.mxu0 0
    %1314 = vmatprep.subr.bf16.mxu0 0
    %1315 = vmatpush2.bf16.msra.mxu0 0
    %1316 = vmatprep.subr.bf16.mxu0 0
    %1317 = vmatpush2.bf16.msra.mxu0 0
    %1318 = vmatprep.subr.bf16.mxu0 0
    %1319 = vmatpush2.bf16.msra.mxu0 0
    %1320 = vmatprep.subr.bf16.mxu0 0
    %1321 = vmatpush2.bf16.msra.mxu0 0
    %1322 = vmatprep.subr.bf16.mxu0 0
    %1323 = vmatpush2.bf16.msra.mxu0 0
    %1324 = vmatprep.subr.bf16.mxu0 0
    %1325 = vmatpush2.bf16.msra.mxu0 0
    %1326 = vmatprep.subr.bf16.mxu0 0
    %1327 = vmatpush2.bf16.msra.mxu0 0
    %1328 = vmatprep.mubr.bf16.mxu0 0
    %1329 = vmatmul.mubr.bf16.gmra.mxu0 %v1295
    %v1330 = vpop.f32.mrf.mxu0
    %v1331 = vadd.f32 0.0, %v1330
    %v1332 = vpop.f32.mrf.mxu0
    %v1333 = vpop.f32.mrf.mxu0
    %v1334 = vpop.f32.mrf.mxu0
    %1335 = vdwg.mxu0
    %v1336 = vadd.f32 %v1294, %v1331
    %v1337 = vadd.f32 %v1336, %v1336
    %v1338 = vsel %vm237, %v1337, %v1336
    %v1339 = vxor.u32 %v1338, 2147483648
    %v1340 = vmul.f32 %v1339, 1.442695
    %v1341 = vpow.pop %v1340
    %v1342 = vadd.f32 %v1341, 1.0
    %v1343 = vrcp.pop %v1342
    %v1344 = vmul.f32 1.0, %v1343
    %v1345 = vadd.f32 %v1344, %v1344
    %v1346 = vsub.f32 %v1345, 1.0
    %v1347 = vsel %vm237, %v1346, %v1344
    %1348 = vrot.lane.b32.xlu0 %v1347, 64
    %v1349 = vpop.permute.xlu0 %1348
    %1350 = vrot.lane.b32.xlu0 %v1347, 96
    %v1351 = vpop.permute.xlu0 %1350
    %1352 = vrot.lane.b32.xlu0 %v1347, 32
    %v1353 = vpop.permute.xlu0 %1352
    %v1354 = vmul.f32 %v1351, %v1223
    %v1355 = vmul.f32 %v1347, %v1349
    %v1356 = vadd.f32 %v1354, %v1355
    %v1357 = vtanh.pop %v1356
    %v1358 = vmul.f32 %v1353, %v1357
    %v1359 = vpack.c.bf16 %v1288, %v1288
    %1360 = vmatprep.subr.bf16.mxu0 0
    %1361 = vmatpush1.bf16.msra.mxu0 %v542
    %1362 = vmatprep.subr.bf16.mxu0 0
    %1363 = vmatpush1.bf16.msra.mxu0 %v541
    %1364 = vmatprep.subr.bf16.mxu0 0
    %1365 = vmatpush1.bf16.msra.mxu0 %v540
    %1366 = vmatprep.subr.bf16.mxu0 0
    %1367 = vmatpush1.bf16.msra.mxu0 %v539
    %1368 = vmatprep.subr.bf16.mxu0 0
    %1369 = vmatpush1.bf16.msra.mxu0 %v538
    %1370 = vmatprep.subr.bf16.mxu0 0
    %1371 = vmatpush1.bf16.msra.mxu0 %v537
    %1372 = vmatprep.subr.bf16.mxu0 0
    %1373 = vmatpush1.bf16.msra.mxu0 %v536
    %1374 = vmatprep.subr.bf16.mxu0 0
    %1375 = vmatpush1.bf16.msra.mxu0 %v535
    %1376 = vmatprep.subr.bf16.mxu0 0
    %1377 = vmatpush2.bf16.msra.mxu0 %v550
    %1378 = vmatprep.subr.bf16.mxu0 0
    %1379 = vmatpush2.bf16.msra.mxu0 %v549
    %1380 = vmatprep.subr.bf16.mxu0 0
    %1381 = vmatpush2.bf16.msra.mxu0 %v548
    %1382 = vmatprep.subr.bf16.mxu0 0
    %1383 = vmatpush2.bf16.msra.mxu0 %v547
    %1384 = vmatprep.subr.bf16.mxu0 0
    %1385 = vmatpush2.bf16.msra.mxu0 %v546
    %1386 = vmatprep.subr.bf16.mxu0 0
    %1387 = vmatpush2.bf16.msra.mxu0 %v545
    %1388 = vmatprep.subr.bf16.mxu0 0
    %1389 = vmatpush2.bf16.msra.mxu0 %v544
    %1390 = vmatprep.subr.bf16.mxu0 0
    %1391 = vmatpush2.bf16.msra.mxu0 %v543
    %1392 = vmatprep.mubr.bf16.mxu0 %v1359
    %1393 = vmatmul.mubr.bf16.gmra.mxu0 %v1295
    %v1394 = vpop.f32.mrf.mxu0
    %v1395 = vadd.f32 %v291, %v1394
    %v1396 = vpop.f32.mrf.mxu0
    %v1397 = vpop.f32.mrf.mxu0
    %v1398 = vpop.f32.mrf.mxu0
    %1399 = vdwg.mxu0
    %v1400 = vadd.f32 %v1395, %v1395
    %v1401 = vsel %vm237, %v1400, %v1395
    %v1402 = vxor.u32 %v1401, 2147483648
    %v1403 = vmul.f32 %v1402, 1.442695
    %v1404 = vpow.pop %v1403
    %v1405 = vadd.f32 %v1404, 1.0
    %v1406 = vrcp.pop %v1405
    %v1407 = vmul.f32 1.0, %v1406
    %v1408 = vadd.f32 %v1407, %v1407
    %v1409 = vsub.f32 %v1408, 1.0
    %v1410 = vsel %vm237, %v1409, %v1407
    %1411 = vrot.lane.b32.xlu0 %v1410, 64
    %v1412 = vpop.permute.xlu0 %1411
    %1413 = vrot.lane.b32.xlu0 %v1410, 96
    %v1414 = vpop.permute.xlu0 %1413
    %1415 = vrot.lane.b32.xlu0 %v1410, 32
    %v1416 = vpop.permute.xlu0 %1415
    %v1417 = vmul.f32 %v1414, %v1286
    %v1418 = vmul.f32 %v1410, %v1412
    %v1419 = vadd.f32 %v1417, %v1418
    %v1420 = vtanh.pop %v1419
    %v1421 = vmul.f32 %v1416, %v1420
    %1423 = vrot.lane.b32.xlu0 %v1421, 64
    %v1424 = vpop.permute.xlu0 %1423
    %1426 = vst.msk [vmem:[#allocation3 + $0x8] sm:$0xff] %vm896, %v1424
    %v1427 = vpack.c.bf16 %v1358, %v1358
    %v1428 = vpack.c.bf16 %v1421, %v1421
    %1429 = vmatprep.subr.bf16.mxu0 0
    %1430 = vmatpush1.bf16.msra.mxu0 %v542
    %1431 = vmatprep.subr.bf16.mxu0 0
    %1432 = vmatpush1.bf16.msra.mxu0 %v541
    %1433 = vmatprep.subr.bf16.mxu0 0
    %1434 = vmatpush1.bf16.msra.mxu0 %v540
    %1435 = vmatprep.subr.bf16.mxu0 0
    %1436 = vmatpush1.bf16.msra.mxu0 %v539
    %1437 = vmatprep.subr.bf16.mxu0 0
    %1438 = vmatpush1.bf16.msra.mxu0 %v538
    %1439 = vmatprep.subr.bf16.mxu0 0
    %1440 = vmatpush1.bf16.msra.mxu0 %v537
    %1441 = vmatprep.subr.bf16.mxu0 0
    %1442 = vmatpush1.bf16.msra.mxu0 %v536
    %1443 = vmatprep.subr.bf16.mxu0 0
    %1444 = vmatpush1.bf16.msra.mxu0 %v535
    %1445 = vmatprep.subr.bf16.mxu0 0
    %1446 = vmatpush2.bf16.msra.mxu0 %v550
    %1447 = vmatprep.subr.bf16.mxu0 0
    %1448 = vmatpush2.bf16.msra.mxu0 %v549
    %1449 = vmatprep.subr.bf16.mxu0 0
    %1450 = vmatpush2.bf16.msra.mxu0 %v548
    %1451 = vmatprep.subr.bf16.mxu0 0
    %1452 = vmatpush2.bf16.msra.mxu0 %v547
    %1453 = vmatprep.subr.bf16.mxu0 0
    %1454 = vmatpush2.bf16.msra.mxu0 %v546
    %1455 = vmatprep.subr.bf16.mxu0 0
    %1456 = vmatpush2.bf16.msra.mxu0 %v545
    %1457 = vmatprep.subr.bf16.mxu0 0
    %1458 = vmatpush2.bf16.msra.mxu0 %v544
    %1459 = vmatprep.subr.bf16.mxu0 0
    %1460 = vmatpush2.bf16.msra.mxu0 %v543
    %1461 = vmatprep.mubr.bf16.mxu0 %v1428
    %1462 = vmatmul.mubr.bf16.gmra.mxu0 %v1427
    %v1463 = vpop.f32.mrf.mxu0
    %v1464 = vadd.f32 %v291, %v1463
    %v1465 = vpop.f32.mrf.mxu0
    %v1466 = vpop.f32.mrf.mxu0
    %v1467 = vpop.f32.mrf.mxu0
    %1468 = vdwg.mxu0
    %v1469 = vadd.f32 %v1464, %v1464
    %v1470 = vsel %vm237, %v1469, %v1464
    %v1471 = vxor.u32 %v1470, 2147483648
    %v1472 = vmul.f32 %v1471, 1.442695
    %v1473 = vpow.pop %v1472
    %v1474 = vadd.f32 %v1473, 1.0
    %v1475 = vrcp.pop %v1474
    %v1476 = vmul.f32 1.0, %v1475
    %v1477 = vadd.f32 %v1476, %v1476
    %v1478 = vsub.f32 %v1477, 1.0
    %v1479 = vsel %vm237, %v1478, %v1476
    %1480 = vrot.lane.b32.xlu0 %v1479, 64
    %v1481 = vpop.permute.xlu0 %1480
    %1482 = vrot.lane.b32.xlu0 %v1479, 96
    %v1483 = vpop.permute.xlu0 %1482
    %1484 = vrot.lane.b32.xlu0 %v1479, 32
    %v1485 = vpop.permute.xlu0 %1484
    %v1486 = vmul.f32 %v1483, %v1419
    %v1487 = vmul.f32 %v1479, %v1481
    %v1488 = vadd.f32 %v1486, %v1487
    %v1489 = vtanh.pop %v1488
    %v1490 = vmul.f32 %v1485, %v1489
    %1492 = vrot.lane.b32.xlu0 %v1490, 96
    %v1493 = vpop.permute.xlu0 %1492
    %1495 = vst.msk [vmem:[#allocation3 + $0x8] sm:$0xff] %vm1030, %v1493
    %v1496 = vld [vmem:[#allocation3] sm:$0xff]
    %v1497 = vld [vmem:[#allocation3 + $0x8] sm:$0xff]
    %v1498 = vpack.c.bf16 %v1496, %v1496
    %v1499 = vpack.c.bf16 %v1497, %v1497
    %v1500 = vld [vmem:[#allocation9] sm:$0xf]
    %v1501 = vld [vmem:[#allocation9 + $0x4] sm:$0xf]
    %v1502 = vld [vmem:[#allocation9 + $0x8] sm:$0xf]
    %v1503 = vld [vmem:[#allocation9 + $0xc] sm:$0xf]
    %v1504 = vld [vmem:[#allocation9 + $0x10] sm:$0xf]
    %v1505 = vld [vmem:[#allocation9 + $0x14] sm:$0xf]
    %v1506 = vld [vmem:[#allocation9 + $0x18] sm:$0xf]
    %v1507 = vld [vmem:[#allocation9 + $0x1c] sm:$0xf]
    %v1508 = vld [vmem:[#allocation9 + $0x20] sm:$0xf]
    %v1509 = vld [vmem:[#allocation9 + $0x24] sm:$0xf]
    %v1510 = vld [vmem:[#allocation9 + $0x28] sm:$0xf]
    %v1511 = vld [vmem:[#allocation9 + $0x2c] sm:$0xf]
    %v1512 = vld [vmem:[#allocation9 + $0x30] sm:$0xf]
    %v1513 = vld [vmem:[#allocation9 + $0x34] sm:$0xf]
    %v1514 = vld [vmem:[#allocation9 + $0x38] sm:$0xf]
    %v1515 = vld [vmem:[#allocation9 + $0x3c] sm:$0xf]
    %v1516 = vld [vmem:[#allocation9 + $0x40] sm:$0xf]
    %v1517 = vld [vmem:[#allocation9 + $0x44] sm:$0xf]
    %v1518 = vld [vmem:[#allocation9 + $0x48] sm:$0xf]
    %v1519 = vld [vmem:[#allocation9 + $0x4c] sm:$0xf]
    %v1520 = vld [vmem:[#allocation9 + $0x50] sm:$0xf]
    %v1521 = vld [vmem:[#allocation9 + $0x54] sm:$0xf]
    %v1522 = vld [vmem:[#allocation9 + $0x58] sm:$0xf]
    %v1523 = vld [vmem:[#allocation9 + $0x5c] sm:$0xf]
    %v1524 = vld [vmem:[#allocation9 + $0x60] sm:$0xf]
    %v1525 = vld [vmem:[#allocation9 + $0x64] sm:$0xf]
    %v1526 = vld [vmem:[#allocation9 + $0x68] sm:$0xf]
    %v1527 = vld [vmem:[#allocation9 + $0x6c] sm:$0xf]
    %v1528 = vld [vmem:[#allocation9 + $0x70] sm:$0xf]
    %v1529 = vld [vmem:[#allocation9 + $0x74] sm:$0xf]
    %v1530 = vld [vmem:[#allocation9 + $0x78] sm:$0xf]
    %v1531 = vld [vmem:[#allocation9 + $0x7c] sm:$0xf]
    %v1532 = vld [vmem:[%s7] sm:$0x1]
    %v1534 = vlaneseq
    %v1535 = vshrl.u32 %v1534, 7
    %v1536 = vsub.s32 0, %v1535
    %v1537 = vrot.slane %v1532, %v1536
    %v1571 = vunpack.c.l.b16 %v1500
    %v1572 = vunpack.c.l.b16 %v1501
    %v1573 = vunpack.c.l.b16 %v1502
    %v1574 = vunpack.c.l.b16 %v1503
    %v1575 = vunpack.c.l.b16 %v1504
    %v1576 = vunpack.c.l.b16 %v1505
    %v1577 = vunpack.c.l.b16 %v1506
    %v1578 = vunpack.c.l.b16 %v1507
    %v1579 = vunpack.c.l.b16 %v1508
    %v1580 = vunpack.c.l.b16 %v1509
    %v1581 = vunpack.c.l.b16 %v1510
    %v1582 = vunpack.c.l.b16 %v1511
    %v1583 = vunpack.c.l.b16 %v1512
    %v1584 = vunpack.c.l.b16 %v1513
    %v1585 = vunpack.c.l.b16 %v1514
    %v1586 = vunpack.c.l.b16 %v1515
    %v1587 = vunpack.c.l.b16 %v1516
    %v1588 = vunpack.c.l.b16 %v1517
    %v1589 = vunpack.c.l.b16 %v1518
    %v1590 = vunpack.c.l.b16 %v1519
    %v1591 = vunpack.c.l.b16 %v1520
    %v1592 = vunpack.c.l.b16 %v1521
    %v1593 = vunpack.c.l.b16 %v1522
    %v1594 = vunpack.c.l.b16 %v1523
    %v1595 = vunpack.c.l.b16 %v1524
    %v1596 = vunpack.c.l.b16 %v1525
    %v1597 = vunpack.c.l.b16 %v1526
    %v1598 = vunpack.c.l.b16 %v1527
    %v1599 = vunpack.c.l.b16 %v1528
    %v1600 = vunpack.c.l.b16 %v1529
    %v1601 = vunpack.c.l.b16 %v1530
    %v1602 = vunpack.c.l.b16 %v1531
    %v1603 = vpack.c.b16 %v1572, %v1571
    %v1604 = vpack.c.b16 %v1574, %v1573
    %v1605 = vpack.c.b16 %v1576, %v1575
    %v1606 = vpack.c.b16 %v1578, %v1577
    %v1607 = vpack.c.b16 %v1580, %v1579
    %v1608 = vpack.c.b16 %v1582, %v1581
    %v1609 = vpack.c.b16 %v1584, %v1583
    %v1610 = vpack.c.b16 %v1586, %v1585
    %v1611 = vpack.c.b16 %v1588, %v1587
    %v1612 = vpack.c.b16 %v1590, %v1589
    %v1613 = vpack.c.b16 %v1592, %v1591
    %v1614 = vpack.c.b16 %v1594, %v1593
    %v1615 = vpack.c.b16 %v1596, %v1595
    %v1616 = vpack.c.b16 %v1598, %v1597
    %v1617 = vpack.c.b16 %v1600, %v1599
    %v1618 = vpack.c.b16 %v1602, %v1601
    %1635 = vmatprep.subr.bf16.mxu0 0
    %1636 = vmatpush1.bf16.msra.mxu0 %v1610
    %1637 = vmatprep.subr.bf16.mxu0 0
    %1638 = vmatpush1.bf16.msra.mxu0 %v1609
    %1639 = vmatprep.subr.bf16.mxu0 0
    %1640 = vmatpush1.bf16.msra.mxu0 %v1608
    %1641 = vmatprep.subr.bf16.mxu0 0
    %1642 = vmatpush1.bf16.msra.mxu0 %v1607
    %1643 = vmatprep.subr.bf16.mxu0 0
    %1644 = vmatpush1.bf16.msra.mxu0 %v1606
    %1645 = vmatprep.subr.bf16.mxu0 0
    %1646 = vmatpush1.bf16.msra.mxu0 %v1605
    %1647 = vmatprep.subr.bf16.mxu0 0
    %1648 = vmatpush1.bf16.msra.mxu0 %v1604
    %1649 = vmatprep.subr.bf16.mxu0 0
    %1650 = vmatpush1.bf16.msra.mxu0 %v1603
    %1651 = vmatprep.subr.bf16.mxu0 0
    %1652 = vmatpush2.bf16.msra.mxu0 %v1618
    %1653 = vmatprep.subr.bf16.mxu0 0
    %1654 = vmatpush2.bf16.msra.mxu0 %v1617
    %1655 = vmatprep.subr.bf16.mxu0 0
    %1656 = vmatpush2.bf16.msra.mxu0 %v1616
    %1657 = vmatprep.subr.bf16.mxu0 0
    %1658 = vmatpush2.bf16.msra.mxu0 %v1615
    %1659 = vmatprep.subr.bf16.mxu0 0
    %1660 = vmatpush2.bf16.msra.mxu0 %v1614
    %1661 = vmatprep.subr.bf16.mxu0 0
    %1662 = vmatpush2.bf16.msra.mxu0 %v1613
    %1663 = vmatprep.subr.bf16.mxu0 0
    %1664 = vmatpush2.bf16.msra.mxu0 %v1612
    %1665 = vmatprep.subr.bf16.mxu0 0
    %1666 = vmatpush2.bf16.msra.mxu0 %v1611
    %1667 = vmatprep.mubr.bf16.mxu0 %v1499
    %1668 = vmatmul.mubr.bf16.gmra.mxu0 %v1498
    %v1669 = vpop.f32.mrf.mxu0
    %v1670 = vadd.f32 %v1537, %v1669
    %v1671 = vpop.f32.mrf.mxu0
    %v1672 = vpop.f32.mrf.mxu0
    %v1673 = vpop.f32.mrf.mxu0
    %1674 = vdwg.mxu0
    %1675 = vst [vmem:[#allocation10] sm:$0xff] %v1670
    // Predicated region
    $region46: #{tpu_custom_call.1} parent=1 // pred_check
      _
    $region47: #{tpu_custom_call.1} parent=1 // pred_check_branch
      %1677 = sbr.rel (0) target = $region49
    $region48: #{tpu_custom_call.1} parent=1 // pred_region
      %s1679 = ssub.s32 128, 128
      %1680 = vsyncadd [#allocation6], %s1679
      %s1682 = sshll.u32 [#allocation10], 4
      %s1683 = int_to_ptr.vmem [resolvable:$true] %s1682
      %1685 = dma.vmem_to_hbm [thread:$0]  %s1683, 128, %s8, [#allocation6]
    $region49: #{tpu_custom_call.1} parent=1 // pred_fallthru
      _
    // Predicated region
    $region50: #{tpu_custom_call.1} parent=1 // pred_check
      _
    $region51: #{tpu_custom_call.1} parent=1 // pred_check_branch
      %1687 = sbr.rel (0) target = $region53
    $region52: #{tpu_custom_call.1} parent=1 // pred_region
      %1688 = dma.done [#allocation6], 128
    $region53: #{tpu_custom_call.1} parent=1 // pred_fallthru
      _
    %1689 = vsyncpa [#allocation5], 1
    %1690 = vsyncpa [#allocation8], 1
    %1691 = vsyncpa [#allocation6], 1

</llo_original>
